<compile_context>
chip_gen: v7x
topology: tpu7x:2x2x1
jax: 0.10.0
libtpu: 0.0.40
codegen_flags: <defaults>
</compile_context>

<pallas_src>
import math
import numpy as np
import jax
import jax.numpy as jnp
from jax import lax
from jax.experimental import pallas as pl
from jax.experimental.pallas import tpu as pltpu


def _make_kernel(bb: int):
    """bb = per-grid-step batch block (1 on multi-TC chips, b when collapsed)."""
    eps2 = 1e-24  # (torch F.normalize eps = 1e-12) ** 2
    nt = (((1,), (1,)), ((), ()))  # contract the last dim of both operands (A @ B^T)

    def atd_kernel(xt_ref, td_ref, wq_ref, bq_ref, wk_ref, bk_ref,
                   wv_ref, bv_ref, sf_ref, xattn_ref, attn_ref):
        wq = wq_ref[...]   # (rc, c)
        bq = bq_ref[...]   # (rc, 1)
        wk = wk_ref[...]   # (rc, c)
        bk = bk_ref[...]   # (1, rc)
        wv = wv_ref[...]   # (c, c)
        bv = bv_ref[...]   # (c, 1)
        sf = sf_ref[...]   # (m, 1) = 1 + clip(scale,0,1)*log(m)  (precomputed)

        for bi in range(bb):           # static unroll over the batch block
            xt = xt_ref[bi]            # (c, n)   lane-dense: n on lanes
            tdb = td_ref[bi]           # (m, c)

            # --- projections (MXU), all NN / NT contractions ---
            # Q^T = Wq @ X^T + bq              -> (rc, n)
            qt = jnp.dot(wq, xt, preferred_element_type=jnp.float32) + bq
            # K  = TD @ Wk^T + bk              -> (m, rc)
            k = lax.dot_general(tdb, wk, nt,
                                preferred_element_type=jnp.float32) + bk
            # V^T = Wv @ TD^T + bv             -> (c, m)
            vt = lax.dot_general(wv, tdb, nt,
                                 preferred_element_type=jnp.float32) + bv

            # --- L2 normalize (== x / max(||x||, eps), torch.F.normalize) ---
            q_norm = qt * lax.rsqrt(
                jnp.maximum(jnp.sum(qt * qt, axis=0, keepdims=True), eps2))
            k_norm = k * lax.rsqrt(
                jnp.maximum(jnp.sum(k * k, axis=1, keepdims=True), eps2))

            # --- cosine-similarity logits: attn^T = K_norm @ Q_norm^T -> (m, n)
            attn_t = jnp.dot(k_norm, q_norm,
                             preferred_element_type=jnp.float32)
            attn_t = attn_t * sf              # per-token scale, broadcast over n
            attn_ref[bi] = attn_t             # pre-softmax output, lane-dense store

            # --- softmax over the token axis m (sublanes), lane-dense over n ---
            amax = jnp.max(attn_t, axis=0, keepdims=True)      # (1, n)
            e = jnp.exp(attn_t - amax)                          # (m, n)
            w = e * pl.reciprocal(jnp.sum(e, axis=0, keepdims=True))

            # --- output: X_attn^T = V^T @ W : (c, m) @ (m, n) -> (c, n) ---
            xattn_ref[bi] = jnp.dot(vt, w, preferred_element_type=jnp.float32)

    return atd_kernel


def _is_single_tensorcore_chip() -> bool:
    """True only when we confidently detect a 1-TensorCore chip (v5e / v6e)."""
    try:
        kind = jax.devices()[0].device_kind.lower()
    except Exception:
        return False
    return any(t in kind for t in ("v5e", "v5 lite", "v6e", "v6 lite", "v4 lite"))


def atd_attention(x, td, wq, bq, wk, bk, wv, bv, scale, *, collapse_batch=None):
    """ATD cross-attention forward.

    x: (b, n, c), td: (b, m, c)
    wq/wk: (rc, c), wv: (c, c)    (PyTorch nn.Linear layout: (out, in))
    bq/bk: (rc,),  bv: (c,),  scale: (m,)
    Returns x_attn (b, n, c), attn (b, n, m) (pre-softmax, post-scale).
    """
    b, n, c = x.shape
    _, m, _ = td.shape
    rc = wq.shape[0]

    if collapse_batch is None:
        # Single step on 1-TC chips (removes per-grid-step overhead, <1 MiB fits
        # VMEM); keep grid=(b,) "parallel" on multi-TC chips (v7x) to split work.
        collapse_batch = _is_single_tensorcore_chip()
    bb = b if collapse_batch else 1

    # Lane-dense layout: token axis n goes to the lane (last) dim.
    x_t = jnp.swapaxes(x, 1, 2)                                   # (b, c, n)

    bq_c = bq.reshape(rc, 1).astype(jnp.float32)
    bk_r = bk.reshape(1, rc).astype(jnp.float32)
    bv_c = bv.reshape(c, 1).astype(jnp.float32)
    # Constant per-token logit scale, computed once (not per grid step).
    sf = (1.0 + jnp.clip(scale, 0.0, 1.0) * math.log(m)).reshape(m, 1)
    sf = sf.astype(jnp.float32)

    kernel = _make_kernel(bb)

    grid_spec = pltpu.PrefetchScalarGridSpec(
        num_scalar_prefetch=0,
        grid=(b // bb,),
        in_specs=[
            pl.BlockSpec((bb, c, n), lambda i: (i, 0, 0)),   # x^T
            pl.BlockSpec((bb, m, c), lambda i: (i, 0, 0)),   # td
            pl.BlockSpec((rc, c), lambda i: (0, 0)),         # wq
            pl.BlockSpec((rc, 1), lambda i: (0, 0)),         # bq
            pl.BlockSpec((rc, c), lambda i: (0, 0)),         # wk
            pl.BlockSpec((1, rc), lambda i: (0, 0)),         # bk
            pl.BlockSpec((c, c), lambda i: (0, 0)),          # wv
            pl.BlockSpec((c, 1), lambda i: (0, 0)),          # bv
            pl.BlockSpec((m, 1), lambda i: (0, 0)),          # scale factor
        ],
        out_specs=[
            pl.BlockSpec((bb, c, n), lambda i: (i, 0, 0)),   # x_attn^T
            pl.BlockSpec((bb, m, n), lambda i: (i, 0, 0)),   # attn^T
        ],
    )

    xattn_t, attn_t = pl.pallas_call(
        kernel,
        out_shape=(
            jax.ShapeDtypeStruct((b, c, n), jnp.float32),
            jax.ShapeDtypeStruct((b, m, n), jnp.float32),
        ),
        grid_spec=grid_spec,
        compiler_params=pltpu.CompilerParams(
            dimension_semantics=("parallel",)),
    )(x_t, td, wq, bq_c, wk, bk_r, wv, bv_c, sf)

    # Back to the module's (b, n, c) / (b, n, m) output contract.
    return jnp.swapaxes(xattn_t, 1, 2), jnp.swapaxes(attn_t, 1, 2)


def _xavier_uniform(key, fan_in, fan_out, shape):
    bound = math.sqrt(6.0 / (fan_in + fan_out))
    return jax.random.uniform(key, shape, jnp.float32, minval=-bound, maxval=bound)


def _reference(x, td, wq, bq, wk, bk, wv, bv, scale):
    """Pure-JAX reference mirroring the PyTorch forward (highest-precision dots)."""
    m = td.shape[1]
    hp = jax.lax.Precision.HIGHEST
    q = jnp.einsum("bnc,rc->bnr", x, wq, precision=hp) + bq
    k = jnp.einsum("bmc,rc->bmr", td, wk, precision=hp) + bk
    v = jnp.einsum("bmc,dc->bmd", td, wv, precision=hp) + bv
    qn = q / jnp.maximum(jnp.linalg.norm(q, axis=-1, keepdims=True), 1e-12)
    kn = k / jnp.maximum(jnp.linalg.norm(k, axis=-1, keepdims=True), 1e-12)
    attn = jnp.einsum("bnr,bmr->bnm", qn, kn, precision=hp)
    s = jnp.clip(scale, 0.0, 1.0)
    attn = attn * (1.0 + s[None, None, :] * math.log(m))
    w = jax.nn.softmax(attn, axis=-1)
    return jnp.einsum("bnm,bmc->bnc", w, v, precision=hp), attn


if __name__ == "__main__":
    # Module hyper-parameters (small, consistent with the forward contract)
    dim = 32            # c
    h, w = 16, 16       # input_resolution -> n = 256
    num_tokens = 64     # m
    reducted_dim = 8    # rc
    b = 2
    n = h * w

    key = jax.random.PRNGKey(0)
    keys = jax.random.split(key, 5)

    # Deterministic parameter init (xavier_uniform weights, zero bias, scale=0.5)
    # Weights in PyTorch nn.Linear layout: (out_features, in_features).
    wq = _xavier_uniform(keys[0], dim, reducted_dim, (reducted_dim, dim))
    wk = _xavier_uniform(keys[1], dim, reducted_dim, (reducted_dim, dim))
    wv = _xavier_uniform(keys[2], dim, dim, (dim, dim))
    bq = jnp.zeros((reducted_dim,), jnp.float32)
    bk = jnp.zeros((reducted_dim,), jnp.float32)
    bv = jnp.zeros((dim,), jnp.float32)
    scale = jnp.full((num_tokens,), 0.5, jnp.float32)

    # Example inputs
    x = jax.random.normal(keys[3], (b, n, dim), jnp.float32)
    td = jax.random.normal(keys[4], (b, num_tokens, dim), jnp.float32)

    fwd = jax.jit(atd_attention)
    x_attn, attn = fwd(x, td, wq, bq, wk, bk, wv, bv, scale)
    jax.block_until_ready((x_attn, attn))

    # Verify against a pure-JAX reference of the PyTorch forward
    x_ref, attn_ref = _reference(x, td, wq, bq, wk, bk, wv, bv, scale)
    np.testing.assert_allclose(np.asarray(attn), np.asarray(attn_ref),
                               rtol=1e-3, atol=1e-4)
    np.testing.assert_allclose(np.asarray(x_attn), np.asarray(x_ref),
                               rtol=1e-3, atol=1e-4)

    print("KERNEL_OK")
</pallas_src>

<mosaic_0001>
module attributes {stable_mosaic.version = 11 : i64} {
  func.func @atd_kernel(%arg0: i32, %arg1: memref<1x32x256xf32, #tpu.memory_space<vmem>>, %arg2: memref<1x64x32xf32, #tpu.memory_space<vmem>>, %arg3: memref<8x32xf32, #tpu.memory_space<vmem>>, %arg4: memref<8x1xf32, #tpu.memory_space<vmem>>, %arg5: memref<8x32xf32, #tpu.memory_space<vmem>>, %arg6: memref<1x8xf32, #tpu.memory_space<vmem>>, %arg7: memref<32x32xf32, #tpu.memory_space<vmem>>, %arg8: memref<32x1xf32, #tpu.memory_space<vmem>>, %arg9: memref<64x1xf32, #tpu.memory_space<vmem>>, %arg10: memref<1x32x256xf32, #tpu.memory_space<vmem>>, %arg11: memref<1x64x256xf32, #tpu.memory_space<vmem>>) attributes {dimension_semantics = [#tpu.dimension_semantics<parallel>], iteration_bounds = array<i64: 2>, scalar_prefetch = 0 : i64, scratch_operands = 0 : i64, tpu.core_type = #tpu.core_type<tc>, window_params = [{transform_indices = @transform_0, window_bounds = array<i64: 1, 32, 256>}, {transform_indices = @transform_1, window_bounds = array<i64: 1, 64, 32>}, {pipeline_mode = #tpu.pipeline_mode<synchronous>, transform_indices = @transform_2, window_bounds = array<i64: 8, 32>}, {pipeline_mode = #tpu.pipeline_mode<synchronous>, transform_indices = @transform_3, window_bounds = array<i64: 8, 1>}, {pipeline_mode = #tpu.pipeline_mode<synchronous>, transform_indices = @transform_4, window_bounds = array<i64: 8, 32>}, {pipeline_mode = #tpu.pipeline_mode<synchronous>, transform_indices = @transform_5, window_bounds = array<i64: 1, 8>}, {pipeline_mode = #tpu.pipeline_mode<synchronous>, transform_indices = @transform_6, window_bounds = array<i64: 32, 32>}, {pipeline_mode = #tpu.pipeline_mode<synchronous>, transform_indices = @transform_7, window_bounds = array<i64: 32, 1>}, {pipeline_mode = #tpu.pipeline_mode<synchronous>, transform_indices = @transform_8, window_bounds = array<i64: 64, 1>}, {transform_indices = @transform_9, window_bounds = array<i64: 1, 32, 256>}, {transform_indices = @transform_10, window_bounds = array<i64: 1, 64, 256>}]} {
    %c0 = arith.constant 0 : index
    %c0_0 = arith.constant 0 : index
    %0 = vector.load %arg3[%c0, %c0_0] : memref<8x32xf32, #tpu.memory_space<vmem>>, vector<8x32xf32>
    %c0_1 = arith.constant 0 : index
    %c0_2 = arith.constant 0 : index
    %1 = vector.load %arg4[%c0_1, %c0_2] : memref<8x1xf32, #tpu.memory_space<vmem>>, vector<8x1xf32>
    %c0_3 = arith.constant 0 : index
    %c0_4 = arith.constant 0 : index
    %2 = vector.load %arg5[%c0_3, %c0_4] : memref<8x32xf32, #tpu.memory_space<vmem>>, vector<8x32xf32>
    %c0_5 = arith.constant 0 : index
    %c0_6 = arith.constant 0 : index
    %3 = vector.load %arg6[%c0_5, %c0_6] : memref<1x8xf32, #tpu.memory_space<vmem>>, vector<1x8xf32>
    %c0_7 = arith.constant 0 : index
    %c0_8 = arith.constant 0 : index
    %4 = vector.load %arg7[%c0_7, %c0_8] : memref<32x32xf32, #tpu.memory_space<vmem>>, vector<32x32xf32>
    %c0_9 = arith.constant 0 : index
    %c0_10 = arith.constant 0 : index
    %5 = vector.load %arg8[%c0_9, %c0_10] : memref<32x1xf32, #tpu.memory_space<vmem>>, vector<32x1xf32>
    %c0_11 = arith.constant 0 : index
    %c0_12 = arith.constant 0 : index
    %6 = vector.load %arg9[%c0_11, %c0_12] : memref<64x1xf32, #tpu.memory_space<vmem>>, vector<64x1xf32>
    %c0_13 = arith.constant 0 : index
    %c0_14 = arith.constant 0 : index
    %c0_15 = arith.constant 0 : index
    %7 = vector.load %arg1[%c0_13, %c0_14, %c0_15] : memref<1x32x256xf32, #tpu.memory_space<vmem>>, vector<1x32x256xf32>
    %8 = vector.shape_cast %7 : vector<1x32x256xf32> to vector<32x256xf32>
    %c0_16 = arith.constant 0 : index
    %c0_17 = arith.constant 0 : index
    %c0_18 = arith.constant 0 : index
    %9 = vector.load %arg2[%c0_16, %c0_17, %c0_18] : memref<1x64x32xf32, #tpu.memory_space<vmem>>, vector<1x64x32xf32>
    %10 = vector.shape_cast %9 : vector<1x64x32xf32> to vector<64x32xf32>
    %cst = arith.constant dense<0.000000e+00> : vector<8x256xf32>
    %11 = tpu.matmul %0, %8, %cst {dimension_numbers = #tpu.dot_dimension_numbers<[1], [0], [0], [1], [0, 0, 1, 1], [], []>} : vector<8x32xf32>, vector<32x256xf32>, vector<8x256xf32> -> vector<8x256xf32>
    %12 = vector.broadcast %1 : vector<8x1xf32> to vector<8x256xf32>
    %13 = arith.addf %11, %12 : vector<8x256xf32>
    %cst_19 = arith.constant dense<0.000000e+00> : vector<64x8xf32>
    %14 = tpu.matmul %10, %2, %cst_19 {dimension_numbers = #tpu.dot_dimension_numbers<[1], [1], [0], [0], [0, 0, 1, 0], [], []>} : vector<64x32xf32>, vector<8x32xf32>, vector<64x8xf32> -> vector<64x8xf32>
    %15 = vector.broadcast %3 : vector<1x8xf32> to vector<64x8xf32>
    %16 = arith.addf %14, %15 : vector<64x8xf32>
    %cst_20 = arith.constant dense<0.000000e+00> : vector<32x64xf32>
    %17 = tpu.matmul %4, %10, %cst_20 {dimension_numbers = #tpu.dot_dimension_numbers<[1], [1], [0], [0], [0, 0, 1, 0], [], []>} : vector<32x32xf32>, vector<64x32xf32>, vector<32x64xf32> -> vector<32x64xf32>
    %18 = vector.broadcast %5 : vector<32x1xf32> to vector<32x64xf32>
    %19 = arith.addf %17, %18 : vector<32x64xf32>
    %20 = arith.mulf %13, %13 : vector<8x256xf32>
    %cst_21 = arith.constant dense<0.000000e+00> : vector<256xf32>
    %21 = vector.multi_reduction <add>, %20, %cst_21 [0] : vector<8x256xf32> to vector<256xf32>
    %22 = vector.shape_cast %21 : vector<256xf32> to vector<1x256xf32>
    %cst_22 = arith.constant 1.000000e-24 : f32
    %23 = vector.broadcast %cst_22 : f32 to vector<1x256xf32>
    %24 = arith.maximumf %22, %23 : vector<1x256xf32>
    %25 = math.rsqrt %24 : vector<1x256xf32>
    %26 = vector.broadcast %25 : vector<1x256xf32> to vector<8x256xf32>
    %27 = arith.mulf %13, %26 : vector<8x256xf32>
    %28 = arith.mulf %16, %16 : vector<64x8xf32>
    %cst_23 = arith.constant dense<0.000000e+00> : vector<64xf32>
    %29 = vector.multi_reduction <add>, %28, %cst_23 [1] : vector<64x8xf32> to vector<64xf32>
    %30 = vector.shape_cast %29 : vector<64xf32> to vector<64x1xf32>
    %cst_24 = arith.constant 1.000000e-24 : f32
    %31 = vector.broadcast %cst_24 : f32 to vector<64x1xf32>
    %32 = arith.maximumf %30, %31 : vector<64x1xf32>
    %33 = math.rsqrt %32 : vector<64x1xf32>
    %34 = vector.broadcast %33 : vector<64x1xf32> to vector<64x8xf32>
    %35 = arith.mulf %16, %34 : vector<64x8xf32>
    %cst_25 = arith.constant dense<0.000000e+00> : vector<64x256xf32>
    %36 = tpu.matmul %35, %27, %cst_25 {dimension_numbers = #tpu.dot_dimension_numbers<[1], [0], [0], [1], [0, 0, 1, 1], [], []>} : vector<64x8xf32>, vector<8x256xf32>, vector<64x256xf32> -> vector<64x256xf32>
    %37 = vector.broadcast %6 : vector<64x1xf32> to vector<64x256xf32>
    %38 = arith.mulf %36, %37 : vector<64x256xf32>
    %c0_26 = arith.constant 0 : index
    %c0_27 = arith.constant 0 : index
    %c0_28 = arith.constant 0 : index
    %39 = vector.load %arg11[%c0_26, %c0_27, %c0_28] : memref<1x64x256xf32, #tpu.memory_space<vmem>>, vector<1x64x256xf32>
    %40 = vector.shape_cast %39 : vector<1x64x256xf32> to vector<64x256xf32>
    %41 = vector.shape_cast %38 : vector<64x256xf32> to vector<1x64x256xf32>
    tpu.vector_store %arg11[%c0_26, %c0_27, %c0_28], %41 {strides = array<i32>} : memref<1x64x256xf32, #tpu.memory_space<vmem>>, vector<1x64x256xf32>,
    %cst_29 = arith.constant dense<0xFF800000> : vector<256xf32>
    %42 = vector.multi_reduction <maximumf>, %38, %cst_29 [0] : vector<64x256xf32> to vector<256xf32>
    %43 = vector.shape_cast %42 : vector<256xf32> to vector<1x256xf32>
    %44 = vector.broadcast %43 : vector<1x256xf32> to vector<64x256xf32>
    %45 = arith.subf %38, %44 : vector<64x256xf32>
    %46 = math.exp %45 : vector<64x256xf32>
    %cst_30 = arith.constant dense<0.000000e+00> : vector<256xf32>
    %47 = vector.multi_reduction <add>, %46, %cst_30 [0] : vector<64x256xf32> to vector<256xf32>
    %48 = vector.shape_cast %47 : vector<256xf32> to vector<1x256xf32>
    %49 = tpu.reciprocal %48 : vector<1x256xf32> -> vector<1x256xf32>
    %50 = vector.broadcast %49 : vector<1x256xf32> to vector<64x256xf32>
    %51 = arith.mulf %46, %50 : vector<64x256xf32>
    %cst_31 = arith.constant dense<0.000000e+00> : vector<32x256xf32>
    %52 = tpu.matmul %19, %51, %cst_31 {dimension_numbers = #tpu.dot_dimension_numbers<[1], [0], [0], [1], [0, 0, 1, 1], [], []>} : vector<32x64xf32>, vector<64x256xf32>, vector<32x256xf32> -> vector<32x256xf32>
    %c0_32 = arith.constant 0 : index
    %c0_33 = arith.constant 0 : index
    %c0_34 = arith.constant 0 : index
    %53 = vector.load %arg10[%c0_32, %c0_33, %c0_34] : memref<1x32x256xf32, #tpu.memory_space<vmem>>, vector<1x32x256xf32>
    %54 = vector.shape_cast %53 : vector<1x32x256xf32> to vector<32x256xf32>
    %55 = vector.shape_cast %52 : vector<32x256xf32> to vector<1x32x256xf32>
    tpu.vector_store %arg10[%c0_32, %c0_33, %c0_34], %55 {strides = array<i32>} : memref<1x32x256xf32, #tpu.memory_space<vmem>>, vector<1x32x256xf32>,
    return
  }
  func.func @transform_0(%arg0: i32) -> (i32, i32, i32) {
    %c0_i32 = arith.constant 0 : i32
    %c0_i32_0 = arith.constant 0 : i32
    %c0_i32_1 = arith.constant 0 : i32
    return %arg0, %c0_i32, %c0_i32_0 : i32, i32, i32
  }
  func.func @transform_1(%arg0: i32) -> (i32, i32, i32) {
    %c0_i32 = arith.constant 0 : i32
    %c0_i32_0 = arith.constant 0 : i32
    %c0_i32_1 = arith.constant 0 : i32
    return %arg0, %c0_i32, %c0_i32_0 : i32, i32, i32
  }
  func.func @transform_2(%arg0: i32) -> (i32, i32) {
    %c0_i32 = arith.constant 0 : i32
    %c0_i32_0 = arith.constant 0 : i32
    %c0_i32_1 = arith.constant 0 : i32
    return %c0_i32, %c0_i32_0 : i32, i32
  }
  func.func @transform_3(%arg0: i32) -> (i32, i32) {
    %c0_i32 = arith.constant 0 : i32
    %c0_i32_0 = arith.constant 0 : i32
    %c0_i32_1 = arith.constant 0 : i32
    return %c0_i32, %c0_i32_0 : i32, i32
  }
  func.func @transform_4(%arg0: i32) -> (i32, i32) {
    %c0_i32 = arith.constant 0 : i32
    %c0_i32_0 = arith.constant 0 : i32
    %c0_i32_1 = arith.constant 0 : i32
    return %c0_i32, %c0_i32_0 : i32, i32
  }
  func.func @transform_5(%arg0: i32) -> (i32, i32) {
    %c0_i32 = arith.constant 0 : i32
    %c0_i32_0 = arith.constant 0 : i32
    %c0_i32_1 = arith.constant 0 : i32
    return %c0_i32, %c0_i32_0 : i32, i32
  }
  func.func @transform_6(%arg0: i32) -> (i32, i32) {
    %c0_i32 = arith.constant 0 : i32
    %c0_i32_0 = arith.constant 0 : i32
    %c0_i32_1 = arith.constant 0 : i32
    return %c0_i32, %c0_i32_0 : i32, i32
  }
  func.func @transform_7(%arg0: i32) -> (i32, i32) {
    %c0_i32 = arith.constant 0 : i32
    %c0_i32_0 = arith.constant 0 : i32
    %c0_i32_1 = arith.constant 0 : i32
    return %c0_i32, %c0_i32_0 : i32, i32
  }
  func.func @transform_8(%arg0: i32) -> (i32, i32) {
    %c0_i32 = arith.constant 0 : i32
    %c0_i32_0 = arith.constant 0 : i32
    %c0_i32_1 = arith.constant 0 : i32
    return %c0_i32, %c0_i32_0 : i32, i32
  }
  func.func @transform_9(%arg0: i32) -> (i32, i32, i32) {
    %c0_i32 = arith.constant 0 : i32
    %c0_i32_0 = arith.constant 0 : i32
    %c0_i32_1 = arith.constant 0 : i32
    return %arg0, %c0_i32, %c0_i32_0 : i32, i32, i32
  }
  func.func @transform_10(%arg0: i32) -> (i32, i32, i32) {
    %c0_i32 = arith.constant 0 : i32
    %c0_i32_0 = arith.constant 0 : i32
    %c0_i32_1 = arith.constant 0 : i32
    return %arg0, %c0_i32, %c0_i32_0 : i32, i32, i32
  }
}

</mosaic_0001>

<llo_original>
// kernel: atd_attention.1
$region0: #{atd_attention.1}
  #allocation0 [shape = 'u32[]', space=smem, size = 0x4, offset = 0x4, fixed_abs, tag = 'smem constant byte address 0x4 - core index']
  #allocation1 [shape = 'u32[144,128]{1,0:T(1,128)}', space=vmem, size = 0x12000, scoped, tag = 'internal scratch']
  %s0 = inlined_call_operand.vmem [shape: f32[2,32,256], index: 0, kind: input, shape index: {}]
  %s1 = inlined_call_operand.vmem [shape: f32[2,64,32], index: 1, kind: input, shape index: {}]
  %s2 = inlined_call_operand.vmem [shape: f32[8,32], index: 2, kind: input, shape index: {}]
  %s3 = inlined_call_operand.vmem [shape: f32[8,1], index: 3, kind: input, shape index: {}]
  %s4 = inlined_call_operand.vmem [shape: f32[8,32], index: 4, kind: input, shape index: {}]
  %s5 = inlined_call_operand.vmem [shape: f32[1,8], index: 5, kind: input, shape index: {}]
  %s6 = inlined_call_operand.vmem [shape: f32[32,32], index: 6, kind: input, shape index: {}]
  %s7 = inlined_call_operand.vmem [shape: f32[32,1], index: 7, kind: input, shape index: {}]
  %s8 = inlined_call_operand.vmem [shape: f32[64,1], index: 8, kind: input, shape index: {}]
  %s9 = inlined_call_operand.hbm [shape: f32[2,32,256], index: 9, kind: output, shape index: {0}]
  %s10 = inlined_call_operand.hbm [shape: f32[2,64,256], index: 10, kind: output, shape index: {1}]
  %11 = xla_tuple %s9, %s10
  %s12 = sld [smem:[#allocation0]]
  $region77: #{atd_attention.1} parent=0
    _
  %s14 = ssub.s32 1, %s12
  %s15 = scalar_select 0, %s14, %s12
  $region1: #{atd_attention.1} parent=0
    #allocation2 [shape = 'u8[65536]{0}', space=vmem, size = 0x10000, scoped, tag = 'output window, operand 0']
    #allocation3 [shape = 's32[2]{0}', space=sflag, size = 0x8, scoped, tag = 'scoped memory for atd_attention.1']
    #allocation4 [shape = 'u8[131072]{0}', space=vmem, size = 0x20000, scoped, tag = 'output window, operand 1']
    #allocation5 [shape = 's32[2]{0}', space=sflag, size = 0x8, scoped, tag = 'scoped memory for atd_attention.1']
    %16 = vsyncpa [#allocation3], 0
    %s17 = scalar_lea.sflag [#allocation3], 1
    %18 = vsyncpa %s17, 0
    %19 = vsyncpa [#allocation5], 0
    %s20 = scalar_lea.sflag [#allocation5], 1
    %21 = vsyncpa %s20, 0
    loop: start=0, step=1, limit=4
    $region2: #{atd_attention.1} parent=1 // loop_pre_header
      _
    $region3: #{atd_attention.1} parent=1 // loop_header
      %s23 = sphi 0, %s27
      %p24 = scmp.ge.s32.totalorder %s23, 4
      %s33 = sphi 0, %s35
      %s36 = sphi 0, %s33
      %s37 = sphi 0, %s36
      %s53 = sphi 0, %s37
      %s59 = sphi 0, %s61
      %s62 = sphi 0, %s59
      %s63 = sphi 0, %s62
      %s79 = sphi 0, %s63
      %s83 = sphi 0, %s83
      %s85 = sphi 0, %s83
      %s86 = sphi 0, %s85
      %s100 = sphi 0, %s86
      %s104 = sphi 0, %s104
      %s106 = sphi 0, %s104
      %s107 = sphi 0, %s106
      %s121 = sphi 0, %s107
      %s125 = sphi 0, %s125
      %s127 = sphi 0, %s125
      %s128 = sphi 0, %s127
      %s142 = sphi 0, %s128
      %s146 = sphi 0, %s146
      %s148 = sphi 0, %s146
      %s149 = sphi 0, %s148
      %s163 = sphi 0, %s149
      %s167 = sphi 0, %s167
      %s169 = sphi 0, %s167
      %s170 = sphi 0, %s169
      %s184 = sphi 0, %s170
      %s188 = sphi 0, %s188
      %s190 = sphi 0, %s188
      %s191 = sphi 0, %s190
      %s205 = sphi 0, %s191
      %s209 = sphi 0, %s209
      %s211 = sphi 0, %s209
      %s212 = sphi 0, %s211
      %s226 = sphi 0, %s212
      %s232 = sphi 0, %s234
      %s235 = sphi 0, %s232
      %s236 = sphi 0, %s235
      %s252 = sphi 0, %s236
      %s258 = sphi 0, %s260
      %s261 = sphi 0, %s258
      %s262 = sphi 0, %s261
      %s278 = sphi 0, %s262
    $region4: #{atd_attention.1} parent=1 // loop_header_branch
      %26 = sbr.rel (%p24) target = $region8
    $region5: #{atd_attention.1} parent=1 // loop_body
      %s28 = ssub.s32 %s23, 1
      %s29 = ssub.s32 %s23, 2
      %s30 = sadd.s32 %s23, 1
      %s31 = ssub.s32 %s23, %s30
      %p32 = scmp.eq.s32.totalorder %s31, 0
      %s34 = sadd.s32 %s33, 1
      %s35 = scalar_select %p32, %s33, %s34
      %p38 = pneg %p32
      %p39 = scmp.eq.s32.totalorder %s23, 1
      %p40 = por %p38, %p39
      %p41 = scmp.ne.s32.totalorder %s33, %s36
      %p42 = scmp.eq.s32.totalorder %s23, 0
      %p43 = por %p41, %p42
      %p44 = scmp.ne.s32.totalorder %s33, %s36
      %p45 = scmp.eq.s32.totalorder %s28, 1
      %p46 = por %p44, %p45
      %p47 = scmp.ne.s32.totalorder %s36, %s37
      %p48 = scmp.eq.s32.totalorder %s28, 0
      %p49 = por %p47, %p48
      %p50 = scmp.ne.s32.totalorder %s36, %s37
      %p51 = scmp.eq.s32.totalorder %s29, 1
      %p52 = por %p50, %p51
      %p54 = scmp.ne.s32.totalorder %s37, %s53
      %p55 = scmp.eq.s32.totalorder %s29, 0
      %p56 = por %p54, %p55
      %s57 = ssub.s32 %s23, %s30
      %p58 = scmp.eq.s32.totalorder %s57, 0
      %s60 = sadd.s32 %s59, 1
      %s61 = scalar_select %p58, %s59, %s60
      %p64 = pneg %p58
      %p65 = scmp.eq.s32.totalorder %s23, 1
      %p66 = por %p64, %p65
      %p67 = scmp.ne.s32.totalorder %s59, %s62
      %p68 = scmp.eq.s32.totalorder %s23, 0
      %p69 = por %p67, %p68
      %p70 = scmp.ne.s32.totalorder %s59, %s62
      %p71 = scmp.eq.s32.totalorder %s28, 1
      %p72 = por %p70, %p71
      %p73 = scmp.ne.s32.totalorder %s62, %s63
      %p74 = scmp.eq.s32.totalorder %s28, 0
      %p75 = por %p73, %p74
      %p76 = scmp.ne.s32.totalorder %s62, %s63
      %p77 = scmp.eq.s32.totalorder %s29, 1
      %p78 = por %p76, %p77
      %p80 = scmp.ne.s32.totalorder %s63, %s79
      %p81 = scmp.eq.s32.totalorder %s29, 0
      %p82 = por %p80, %p81
      %s84 = sadd.s32 %s83, 1
      %p87 = scmp.eq.s32.totalorder %s23, 1
      %p88 = scmp.ne.s32.totalorder %s83, %s85
      %p89 = scmp.eq.s32.totalorder %s23, 0
      %p90 = por %p88, %p89
      %p91 = scmp.ne.s32.totalorder %s83, %s85
      %p92 = scmp.eq.s32.totalorder %s28, 1
      %p93 = por %p91, %p92
      %p94 = scmp.ne.s32.totalorder %s85, %s86
      %p95 = scmp.eq.s32.totalorder %s28, 0
      %p96 = por %p94, %p95
      %p97 = scmp.ne.s32.totalorder %s85, %s86
      %p98 = scmp.eq.s32.totalorder %s29, 1
      %p99 = por %p97, %p98
      %p101 = scmp.ne.s32.totalorder %s86, %s100
      %p102 = scmp.eq.s32.totalorder %s29, 0
      %p103 = por %p101, %p102
      %s105 = sadd.s32 %s104, 1
      %p108 = scmp.eq.s32.totalorder %s23, 1
      %p109 = scmp.ne.s32.totalorder %s104, %s106
      %p110 = scmp.eq.s32.totalorder %s23, 0
      %p111 = por %p109, %p110
      %p112 = scmp.ne.s32.totalorder %s104, %s106
      %p113 = scmp.eq.s32.totalorder %s28, 1
      %p114 = por %p112, %p113
      %p115 = scmp.ne.s32.totalorder %s106, %s107
      %p116 = scmp.eq.s32.totalorder %s28, 0
      %p117 = por %p115, %p116
      %p118 = scmp.ne.s32.totalorder %s106, %s107
      %p119 = scmp.eq.s32.totalorder %s29, 1
      %p120 = por %p118, %p119
      %p122 = scmp.ne.s32.totalorder %s107, %s121
      %p123 = scmp.eq.s32.totalorder %s29, 0
      %p124 = por %p122, %p123
      %s126 = sadd.s32 %s125, 1
      %p129 = scmp.eq.s32.totalorder %s23, 1
      %p130 = scmp.ne.s32.totalorder %s125, %s127
      %p131 = scmp.eq.s32.totalorder %s23, 0
      %p132 = por %p130, %p131
      %p133 = scmp.ne.s32.totalorder %s125, %s127
      %p134 = scmp.eq.s32.totalorder %s28, 1
      %p135 = por %p133, %p134
      %p136 = scmp.ne.s32.totalorder %s127, %s128
      %p137 = scmp.eq.s32.totalorder %s28, 0
      %p138 = por %p136, %p137
      %p139 = scmp.ne.s32.totalorder %s127, %s128
      %p140 = scmp.eq.s32.totalorder %s29, 1
      %p141 = por %p139, %p140
      %p143 = scmp.ne.s32.totalorder %s128, %s142
      %p144 = scmp.eq.s32.totalorder %s29, 0
      %p145 = por %p143, %p144
      %s147 = sadd.s32 %s146, 1
      %p150 = scmp.eq.s32.totalorder %s23, 1
      %p151 = scmp.ne.s32.totalorder %s146, %s148
      %p152 = scmp.eq.s32.totalorder %s23, 0
      %p153 = por %p151, %p152
      %p154 = scmp.ne.s32.totalorder %s146, %s148
      %p155 = scmp.eq.s32.totalorder %s28, 1
      %p156 = por %p154, %p155
      %p157 = scmp.ne.s32.totalorder %s148, %s149
      %p158 = scmp.eq.s32.totalorder %s28, 0
      %p159 = por %p157, %p158
      %p160 = scmp.ne.s32.totalorder %s148, %s149
      %p161 = scmp.eq.s32.totalorder %s29, 1
      %p162 = por %p160, %p161
      %p164 = scmp.ne.s32.totalorder %s149, %s163
      %p165 = scmp.eq.s32.totalorder %s29, 0
      %p166 = por %p164, %p165
      %s168 = sadd.s32 %s167, 1
      %p171 = scmp.eq.s32.totalorder %s23, 1
      %p172 = scmp.ne.s32.totalorder %s167, %s169
      %p173 = scmp.eq.s32.totalorder %s23, 0
      %p174 = por %p172, %p173
      %p175 = scmp.ne.s32.totalorder %s167, %s169
      %p176 = scmp.eq.s32.totalorder %s28, 1
      %p177 = por %p175, %p176
      %p178 = scmp.ne.s32.totalorder %s169, %s170
      %p179 = scmp.eq.s32.totalorder %s28, 0
      %p180 = por %p178, %p179
      %p181 = scmp.ne.s32.totalorder %s169, %s170
      %p182 = scmp.eq.s32.totalorder %s29, 1
      %p183 = por %p181, %p182
      %p185 = scmp.ne.s32.totalorder %s170, %s184
      %p186 = scmp.eq.s32.totalorder %s29, 0
      %p187 = por %p185, %p186
      %s189 = sadd.s32 %s188, 1
      %p192 = scmp.eq.s32.totalorder %s23, 1
      %p193 = scmp.ne.s32.totalorder %s188, %s190
      %p194 = scmp.eq.s32.totalorder %s23, 0
      %p195 = por %p193, %p194
      %p196 = scmp.ne.s32.totalorder %s188, %s190
      %p197 = scmp.eq.s32.totalorder %s28, 1
      %p198 = por %p196, %p197
      %p199 = scmp.ne.s32.totalorder %s190, %s191
      %p200 = scmp.eq.s32.totalorder %s28, 0
      %p201 = por %p199, %p200
      %p202 = scmp.ne.s32.totalorder %s190, %s191
      %p203 = scmp.eq.s32.totalorder %s29, 1
      %p204 = por %p202, %p203
      %p206 = scmp.ne.s32.totalorder %s191, %s205
      %p207 = scmp.eq.s32.totalorder %s29, 0
      %p208 = por %p206, %p207
      %s210 = sadd.s32 %s209, 1
      %p213 = scmp.eq.s32.totalorder %s23, 1
      %p214 = scmp.ne.s32.totalorder %s209, %s211
      %p215 = scmp.eq.s32.totalorder %s23, 0
      %p216 = por %p214, %p215
      %p217 = scmp.ne.s32.totalorder %s209, %s211
      %p218 = scmp.eq.s32.totalorder %s28, 1
      %p219 = por %p217, %p218
      %p220 = scmp.ne.s32.totalorder %s211, %s212
      %p221 = scmp.eq.s32.totalorder %s28, 0
      %p222 = por %p220, %p221
      %p223 = scmp.ne.s32.totalorder %s211, %s212
      %p224 = scmp.eq.s32.totalorder %s29, 1
      %p225 = por %p223, %p224
      %p227 = scmp.ne.s32.totalorder %s212, %s226
      %p228 = scmp.eq.s32.totalorder %s29, 0
      %p229 = por %p227, %p228
      %s230 = ssub.s32 %s23, %s30
      %p231 = scmp.eq.s32.totalorder %s230, 0
      %s233 = sadd.s32 %s232, 1
      %s234 = scalar_select %p231, %s232, %s233
      %p237 = pneg %p231
      %p238 = scmp.eq.s32.totalorder %s23, 1
      %p239 = por %p237, %p238
      %p240 = scmp.ne.s32.totalorder %s232, %s235
      %p241 = scmp.eq.s32.totalorder %s23, 0
      %p242 = por %p240, %p241
      %p243 = scmp.ne.s32.totalorder %s232, %s235
      %p244 = scmp.eq.s32.totalorder %s28, 1
      %p245 = por %p243, %p244
      %p246 = scmp.ne.s32.totalorder %s235, %s236
      %p247 = scmp.eq.s32.totalorder %s28, 0
      %p248 = por %p246, %p247
      %p249 = scmp.ne.s32.totalorder %s235, %s236
      %p250 = scmp.eq.s32.totalorder %s29, 1
      %p251 = por %p249, %p250
      %p253 = scmp.ne.s32.totalorder %s236, %s252
      %p254 = scmp.eq.s32.totalorder %s29, 0
      %p255 = por %p253, %p254
      %s256 = ssub.s32 %s23, %s30
      %p257 = scmp.eq.s32.totalorder %s256, 0
      %s259 = sadd.s32 %s258, 1
      %s260 = scalar_select %p257, %s258, %s259
      %p263 = pneg %p257
      %p264 = scmp.eq.s32.totalorder %s23, 1
      %p265 = por %p263, %p264
      %p266 = scmp.ne.s32.totalorder %s258, %s261
      %p267 = scmp.eq.s32.totalorder %s23, 0
      %p268 = por %p266, %p267
      %p269 = scmp.ne.s32.totalorder %s258, %s261
      %p270 = scmp.eq.s32.totalorder %s28, 1
      %p271 = por %p269, %p270
      %p272 = scmp.ne.s32.totalorder %s261, %s262
      %p273 = scmp.eq.s32.totalorder %s28, 0
      %p274 = por %p272, %p273
      %p275 = scmp.ne.s32.totalorder %s261, %s262
      %p276 = scmp.eq.s32.totalorder %s29, 1
      %p277 = por %p275, %p276
      %p279 = scmp.ne.s32.totalorder %s262, %s278
      %p280 = scmp.eq.s32.totalorder %s29, 0
      %p281 = por %p279, %p280
      %p282 = scmp.le.s32.totalorder 1, %s23
      %p283 = scmp.lt.s32.totalorder %s23, 3
      %p284 = pnand %p282, %p283
      %p285 = pneg %p284
      // Predicated region
      $region9: #{atd_attention.1} parent=5 // pred_check
        _
      $region10: #{atd_attention.1} parent=5 // pred_check_branch
        %287 = sbr.rel (%p284) target = $region12
      $region11: #{atd_attention.1} parent=5 // pred_region
        %s288 = ssub.s32 %s23, 1
        // Predicated region
        $region13: #{atd_attention.1} parent=11 // pred_check
          %p289 = pneg %p96
        $region14: #{atd_attention.1} parent=11 // pred_check_branch
          %291 = sbr.rel (%p289) target = $region16
        $region15: #{atd_attention.1} parent=11 // pred_region
          _
        $region16: #{atd_attention.1} parent=11 // pred_fallthru
          _
        // Predicated region
        $region17: #{atd_attention.1} parent=11 // pred_check
          %p292 = pneg %p117
        $region18: #{atd_attention.1} parent=11 // pred_check_branch
          %294 = sbr.rel (%p292) target = $region20
        $region19: #{atd_attention.1} parent=11 // pred_region
          _
        $region20: #{atd_attention.1} parent=11 // pred_fallthru
          _
        // Predicated region
        $region21: #{atd_attention.1} parent=11 // pred_check
          %p295 = pneg %p138
        $region22: #{atd_attention.1} parent=11 // pred_check_branch
          %297 = sbr.rel (%p295) target = $region24
        $region23: #{atd_attention.1} parent=11 // pred_region
          _
        $region24: #{atd_attention.1} parent=11 // pred_fallthru
          _
        // Predicated region
        $region25: #{atd_attention.1} parent=11 // pred_check
          %p298 = pneg %p159
        $region26: #{atd_attention.1} parent=11 // pred_check_branch
          %300 = sbr.rel (%p298) target = $region28
        $region27: #{atd_attention.1} parent=11 // pred_region
          _
        $region28: #{atd_attention.1} parent=11 // pred_fallthru
          _
        // Predicated region
        $region29: #{atd_attention.1} parent=11 // pred_check
          %p301 = pneg %p180
        $region30: #{atd_attention.1} parent=11 // pred_check_branch
          %303 = sbr.rel (%p301) target = $region32
        $region31: #{atd_attention.1} parent=11 // pred_region
          _
        $region32: #{atd_attention.1} parent=11 // pred_fallthru
          _
        // Predicated region
        $region33: #{atd_attention.1} parent=11 // pred_check
          %p304 = pneg %p201
        $region34: #{atd_attention.1} parent=11 // pred_check_branch
          %306 = sbr.rel (%p304) target = $region36
        $region35: #{atd_attention.1} parent=11 // pred_region
          _
        $region36: #{atd_attention.1} parent=11 // pred_fallthru
          _
        // Predicated region
        $region37: #{atd_attention.1} parent=11 // pred_check
          %p307 = pneg %p222
        $region38: #{atd_attention.1} parent=11 // pred_check_branch
          %309 = sbr.rel (%p307) target = $region40
        $region39: #{atd_attention.1} parent=11 // pred_region
          _
        $region40: #{atd_attention.1} parent=11 // pred_fallthru
          _
      $region12: #{atd_attention.1} parent=5 // pred_fallthru
        _
      %p310 = scmp.lt.s32.totalorder %s23, 2
      // Predicated region
      $region41: #{atd_attention.1} parent=5 // pred_check
        %p311 = pneg %p310
      $region42: #{atd_attention.1} parent=5 // pred_check_branch
        %313 = sbr.rel (%p311) target = $region44
      $region43: #{atd_attention.1} parent=5 // pred_region
        // Predicated region
        $region45: #{atd_attention.1} parent=43 // pred_check
          %p314 = pneg %p43
        $region46: #{atd_attention.1} parent=43 // pred_check_branch
          %316 = sbr.rel (%p314) target = $region48
        $region47: #{atd_attention.1} parent=43 // pred_region
          %p317 = scmp.lt.s32.totalorder %s23, 1
          %s318 = scalar_select %p317, %s23, 1
          %s319 = smul.addr %s318, 8
          %s320 = smul.addr %s319, 8
          %s321 = scalar_lea.vmem %s0, %s320
        $region48: #{atd_attention.1} parent=43 // pred_fallthru
          _
        // Predicated region
        $region49: #{atd_attention.1} parent=43 // pred_check
          %p322 = pneg %p69
        $region50: #{atd_attention.1} parent=43 // pred_check_branch
          %324 = sbr.rel (%p322) target = $region52
        $region51: #{atd_attention.1} parent=43 // pred_region
          %p325 = scmp.lt.s32.totalorder %s23, 1
          %s326 = scalar_select %p325, %s23, 1
          %s327 = smul.addr %s326, 8
          %s328 = smul.addr %s327, 8
          %s329 = scalar_lea.vmem %s1, %s328
        $region52: #{atd_attention.1} parent=43 // pred_fallthru
          _
      $region44: #{atd_attention.1} parent=5 // pred_fallthru
        _
      %p330 = scmp.le.s32.totalorder 1, %s23
      %p331 = scmp.lt.s32.totalorder %s23, 3
      %p332 = pnand %p330, %p331
      %p333 = pneg %p332
      // Predicated region
      $region53: #{atd_attention.1} parent=5 // pred_check
        _
      $region54: #{atd_attention.1} parent=5 // pred_check_branch
        %335 = sbr.rel (%p332) target = $region56
      $region55: #{atd_attention.1} parent=5 // pred_region
        %s336 = ssub.s32 %s23, 1
        %p337 = scmp.lt.s32.totalorder %s28, 1
        %s338 = scalar_select %p337, %s28, 1
        %s339 = smul.addr %s338, 8
        %s340 = smul.addr %s339, 8
        %s341 = scalar_lea.vmem %s0, %s340
        %p342 = pneg %p49
        %p343 = pneg %p46
        %p344 = scmp.lt.s32.totalorder %s28, 1
        %s345 = scalar_select %p344, %s28, 1
        %s346 = smul.addr %s345, 8
        %s347 = smul.addr %s346, 8
        %s348 = scalar_lea.vmem %s1, %s347
        %p349 = pneg %p75
        %p350 = pneg %p72
        %p351 = pneg %p96
        %p352 = pneg %p93
        %p353 = pneg %p117
        %p354 = pneg %p114
        %p355 = pneg %p138
        %p356 = pneg %p135
        %p357 = pneg %p159
        %p358 = pneg %p156
        %p359 = pneg %p180
        %p360 = pneg %p177
        %p361 = pneg %p201
        %p362 = pneg %p198
        %p363 = pneg %p222
        %p364 = pneg %p219
        %p365 = pneg %p248
        %p366 = pneg %p245
        %s367 = sand.u32 %s235, 1
        %s368 = scalar_lea.sflag [#allocation3], %s367
        %s369 = sand.u32 %s235, 1
        %s370 = smul.addr %s369, 64
        %s371 = scalar_lea.vmem [#allocation2], %s370
        %p372 = pneg %p274
        %p373 = pneg %p271
        %s374 = sand.u32 %s261, 1
        %s375 = scalar_lea.sflag [#allocation5], %s374
        %s376 = sand.u32 %s261, 1
        %s377 = smul.addr %s376, 128
        %s378 = scalar_lea.vmem [#allocation4], %s377
        %p379 = scmp.lt.s32.totalorder %s28, 1
        %s380 = scalar_select %p379, %s28, 1
        %s381 = smul.addr %s380, 8
        %s382 = smul.addr %s381, 8
        %s383 = scalar_lea.vmem %s0, %s382
        %p384 = scmp.lt.s32.totalorder %s28, 1
        %s385 = scalar_select %p384, %s28, 1
        %s386 = smul.addr %s385, 8
        %s387 = smul.addr %s386, 8
        %s388 = scalar_lea.vmem %s1, %s387
        %v389 = vld [vmem:[%s2] sm:$0xff]
        %v390 = vld [vmem:[%s3] sm:$0xff]
        %v391 = vld [vmem:[%s4] sm:$0xff]
        %v392 = vld [vmem:[%s5] sm:$0x1]
        %v393 = vld [vmem:[%s6] sm:$0xff]
        %v394 = vld [vmem:[%s6 + $0x8] sm:$0xff]
        %v395 = vld [vmem:[%s6 + $0x10] sm:$0xff]
        %v396 = vld [vmem:[%s6 + $0x18] sm:$0xff]
        %v397 = vld [vmem:[%s7] sm:$0xff]
        %v398 = vld [vmem:[%s7 + $0x8] sm:$0xff]
        %v399 = vld [vmem:[%s7 + $0x10] sm:$0xff]
        %v400 = vld [vmem:[%s7 + $0x18] sm:$0xff]
        %v401 = vld [vmem:[%s8] sm:$0xff]
        %v402 = vld [vmem:[%s8 + $0x8] sm:$0xff]
        %v403 = vld [vmem:[%s8 + $0x10] sm:$0xff]
        %v404 = vld [vmem:[%s8 + $0x18] sm:$0xff]
        %v405 = vld [vmem:[%s8 + $0x20] sm:$0xff]
        %v406 = vld [vmem:[%s8 + $0x28] sm:$0xff]
        %v407 = vld [vmem:[%s8 + $0x30] sm:$0xff]
        %v408 = vld [vmem:[%s8 + $0x38] sm:$0xff]
        %v409 = vld [vmem:[%s383] sm:$0xff]
        %v410 = vld [vmem:[%s383 + $0x8] sm:$0xff]
        %v411 = vld [vmem:[%s383 + $0x10] sm:$0xff]
        %v412 = vld [vmem:[%s383 + $0x18] sm:$0xff]
        %v413 = vld [vmem:[%s383 + $0x20] sm:$0xff]
        %v414 = vld [vmem:[%s383 + $0x28] sm:$0xff]
        %v415 = vld [vmem:[%s383 + $0x30] sm:$0xff]
        %v416 = vld [vmem:[%s383 + $0x38] sm:$0xff]
        %v417 = vld [vmem:[%s388] sm:$0xff]
        %v418 = vld [vmem:[%s388 + $0x8] sm:$0xff]
        %v419 = vld [vmem:[%s388 + $0x10] sm:$0xff]
        %v420 = vld [vmem:[%s388 + $0x18] sm:$0xff]
        %v421 = vld [vmem:[%s388 + $0x20] sm:$0xff]
        %v422 = vld [vmem:[%s388 + $0x28] sm:$0xff]
        %v423 = vld [vmem:[%s388 + $0x30] sm:$0xff]
        %v424 = vld [vmem:[%s388 + $0x38] sm:$0xff]
        %426 = vset.pattern.permute.xlu0 0
        %427 = vperm.xlu0 %426, %v390
        %v428 = vpop.permute.xlu0 %427
        %vm430 = vcmask 261120
        %v432 = vsel %vm430, %v389, 0
        %434 = vmatprep.subr.mxu0 %v410
        %435 = vmatpush1.msra.mxu0 %v409
        %436 = vmatprep.subr.mxu0 %v412
        %437 = vmatpush1.msra.mxu0 %v411
        %438 = vmatprep.subr.mxu0 %v414
        %439 = vmatpush1.msra.mxu0 %v413
        %440 = vmatprep.subr.mxu0 %v416
        %441 = vmatpush1.msra.mxu0 %v415
        %442 = vmatprep.subr.mxu0 0.0
        %443 = vmatpush1.msra.mxu0 0.0
        %444 = vmatprep.subr.mxu0 0.0
        %445 = vmatpush1.msra.mxu0 0.0
        %446 = vmatprep.subr.mxu0 0.0
        %447 = vmatpush1.msra.mxu0 0.0
        %448 = vmatprep.subr.mxu0 0.0
        %449 = vmatpush1.msra.mxu0 0.0
        %450 = vmatprep.subr.mxu0 0.0
        %451 = vmatpush1.msra.mxu0 0.0
        %452 = vmatprep.subr.mxu0 0.0
        %453 = vmatpush1.msra.mxu0 0.0
        %454 = vmatprep.subr.mxu0 0.0
        %455 = vmatpush1.msra.mxu0 0.0
        %456 = vmatprep.subr.mxu0 0.0
        %457 = vmatpush1.msra.mxu0 0.0
        %458 = vmatprep.subr.mxu0 0.0
        %459 = vmatpush1.msra.mxu0 0.0
        %460 = vmatprep.subr.mxu0 0.0
        %461 = vmatpush1.msra.mxu0 0.0
        %462 = vmatprep.subr.mxu0 0.0
        %463 = vmatpush1.msra.mxu0 0.0
        %464 = vmatprep.subr.mxu0 0.0
        %465 = vmatpush1.msra.mxu0 0.0
        %466 = vmatprep.subr.mxu0 0.0
        %467 = vmatpush1.msra.mxu0 0.0
        %468 = vmatprep.subr.mxu0 0.0
        %469 = vmatpush1.msra.mxu0 0.0
        %470 = vmatprep.subr.mxu0 0.0
        %471 = vmatpush1.msra.mxu0 0.0
        %472 = vmatprep.subr.mxu0 0.0
        %473 = vmatpush1.msra.mxu0 0.0
        %474 = vmatprep.subr.mxu0 0.0
        %475 = vmatpush1.msra.mxu0 0.0
        %476 = vmatprep.subr.mxu0 0.0
        %477 = vmatpush1.msra.mxu0 0.0
        %478 = vmatprep.subr.mxu0 0.0
        %479 = vmatpush1.msra.mxu0 0.0
        %480 = vmatprep.subr.mxu0 0.0
        %481 = vmatpush1.msra.mxu0 0.0
        %482 = vmatprep.subr.mxu0 0.0
        %483 = vmatpush1.msra.mxu0 0.0
        %484 = vmatprep.subr.mxu0 0.0
        %485 = vmatpush1.msra.mxu0 0.0
        %486 = vmatprep.subr.mxu0 0.0
        %487 = vmatpush1.msra.mxu0 0.0
        %488 = vmatprep.subr.mxu0 0.0
        %489 = vmatpush1.msra.mxu0 0.0
        %490 = vmatprep.subr.mxu0 0.0
        %491 = vmatpush1.msra.mxu0 0.0
        %492 = vmatprep.subr.mxu0 0.0
        %493 = vmatpush1.msra.mxu0 0.0
        %494 = vmatprep.subr.mxu0 0.0
        %495 = vmatpush1.msra.mxu0 0.0
        %496 = vmatprep.subr.mxu0 0.0
        %497 = vmatpush1.msra.mxu0 0.0
        %498 = vmatprep.mubr.f32.mxu0 0.0
        %499 = vmatmul.mubr.f32.gmra.mrb[0].mxu0 %v432
        %v500 = vpop.f32.mrb[0].mxu0
        %v501 = vadd.f32 %v428, %v500
        %v502 = vpop.f32.mrb[0].mxu0
        %v503 = vadd.f32 %v428, %v502
        %504 = vdwg.mxu0
        %v506 = vlaneseq
        %v507 = vshrl.u32 %v506, 7
        %v508 = vsub.s32 0, %v507
        %v509 = vrot.slane %v392, %v508
        %v512 = vsel %vm430, %v417, 0
        %v515 = vsel %vm430, %v418, 0
        %v518 = vsel %vm430, %v419, 0
        %v521 = vsel %vm430, %v420, 0
        %v524 = vsel %vm430, %v421, 0
        %v527 = vsel %vm430, %v422, 0
        %v530 = vsel %vm430, %v423, 0
        %v533 = vsel %vm430, %v424, 0
        %v536 = vsel %vm430, %v391, 0
        %538 = vmatprep.subr.mxu0 0.0
        %539 = vmatpush1.xpose.msra.mxu0 %v536
        %540 = vmatprep.subr.mxu0 0.0
        %541 = vmatpush1.xpose.msra.mxu0 0.0
        %542 = vmatprep.subr.mxu0 0.0
        %543 = vmatpush1.xpose.msra.mxu0 0.0
        %544 = vmatprep.subr.mxu0 0.0
        %545 = vmatpush1.xpose.msra.mxu0 0.0
        %546 = vmatprep.subr.mxu0 0.0
        %547 = vmatpush1.xpose.msra.mxu0 0.0
        %548 = vmatprep.subr.mxu0 0.0
        %549 = vmatpush1.xpose.msra.mxu0 0.0
        %550 = vmatprep.subr.mxu0 0.0
        %551 = vmatpush1.xpose.msra.mxu0 0.0
        %552 = vmatprep.subr.mxu0 0.0
        %553 = vmatpush1.xpose.msra.mxu0 0.0
        %554 = vmatprep.subr.mxu0 0.0
        %555 = vmatpush1.xpose.msra.mxu0 0.0
        %556 = vmatprep.subr.mxu0 0.0
        %557 = vmatpush1.xpose.msra.mxu0 0.0
        %558 = vmatprep.subr.mxu0 0.0
        %559 = vmatpush1.xpose.msra.mxu0 0.0
        %560 = vmatprep.subr.mxu0 0.0
        %561 = vmatpush1.xpose.msra.mxu0 0.0
        %562 = vmatprep.subr.mxu0 0.0
        %563 = vmatpush1.xpose.msra.mxu0 0.0
        %564 = vmatprep.subr.mxu0 0.0
        %565 = vmatpush1.xpose.msra.mxu0 0.0
        %566 = vmatprep.subr.mxu0 0.0
        %567 = vmatpush1.xpose.msra.mxu0 0.0
        %568 = vmatprep.subr.mxu0 0.0
        %569 = vmatpush1.xpose.msra.mxu0 0.0
        %570 = vmatprep.subr.mxu0 0.0
        %571 = vmatpush1.xpose.msra.mxu0 0.0
        %572 = vmatprep.subr.mxu0 0.0
        %573 = vmatpush1.xpose.msra.mxu0 0.0
        %574 = vmatprep.subr.mxu0 0.0
        %575 = vmatpush1.xpose.msra.mxu0 0.0
        %576 = vmatprep.subr.mxu0 0.0
        %577 = vmatpush1.xpose.msra.mxu0 0.0
        %578 = vmatprep.subr.mxu0 0.0
        %579 = vmatpush1.xpose.msra.mxu0 0.0
        %580 = vmatprep.subr.mxu0 0.0
        %581 = vmatpush1.xpose.msra.mxu0 0.0
        %582 = vmatprep.subr.mxu0 0.0
        %583 = vmatpush1.xpose.msra.mxu0 0.0
        %584 = vmatprep.subr.mxu0 0.0
        %585 = vmatpush1.xpose.msra.mxu0 0.0
        %586 = vmatprep.subr.mxu0 0.0
        %587 = vmatpush1.xpose.msra.mxu0 0.0
        %588 = vmatprep.subr.mxu0 0.0
        %589 = vmatpush1.xpose.msra.mxu0 0.0
        %590 = vmatprep.subr.mxu0 0.0
        %591 = vmatpush1.xpose.msra.mxu0 0.0
        %592 = vmatprep.subr.mxu0 0.0
        %593 = vmatpush1.xpose.msra.mxu0 0.0
        %594 = vmatprep.subr.mxu0 0.0
        %595 = vmatpush1.xpose.msra.mxu0 0.0
        %596 = vmatprep.subr.mxu0 0.0
        %597 = vmatpush1.xpose.msra.mxu0 0.0
        %598 = vmatprep.subr.mxu0 0.0
        %599 = vmatpush1.xpose.msra.mxu0 0.0
        %600 = vmatprep.subr.mxu0 0.0
        %601 = vmatpush1.xpose.msra.mxu0 0.0
        %602 = vmatprep.mubr.f32.mxu0 0.0
        %603 = vmatmul.mubr.f32.gmra.mrb[0].mxu0 %v512
        %v604 = vpop.f32.mrb[0].mxu0
        %v605 = vadd.f32 %v509, %v604
        %v606 = vpop.f32.mrb[0].mxu0
        %607 = vmatprep.mubr.f32.mxu0 0.0
        %608 = vmatmul.mubr.f32.gmra.mrb[0].mxu0 %v515
        %v609 = vpop.f32.mrb[0].mxu0
        %v610 = vadd.f32 %v509, %v609
        %v611 = vpop.f32.mrb[0].mxu0
        %612 = vmatprep.mubr.f32.mxu0 0.0
        %613 = vmatmul.mubr.f32.gmra.mrb[0].mxu0 %v518
        %v614 = vpop.f32.mrb[0].mxu0
        %v615 = vadd.f32 %v509, %v614
        %v616 = vpop.f32.mrb[0].mxu0
        %617 = vmatprep.mubr.f32.mxu0 0.0
        %618 = vmatmul.mubr.f32.gmra.mrb[0].mxu0 %v521
        %v619 = vpop.f32.mrb[0].mxu0
        %v620 = vadd.f32 %v509, %v619
        %v621 = vpop.f32.mrb[0].mxu0
        %622 = vmatprep.mubr.f32.mxu0 0.0
        %623 = vmatmul.mubr.f32.gmra.mrb[0].mxu0 %v524
        %v624 = vpop.f32.mrb[0].mxu0
        %v625 = vadd.f32 %v509, %v624
        %v626 = vpop.f32.mrb[0].mxu0
        %627 = vmatprep.mubr.f32.mxu0 0.0
        %628 = vmatmul.mubr.f32.gmra.mrb[0].mxu0 %v527
        %v629 = vpop.f32.mrb[0].mxu0
        %v630 = vadd.f32 %v509, %v629
        %v631 = vpop.f32.mrb[0].mxu0
        %632 = vmatprep.mubr.f32.mxu0 0.0
        %633 = vmatmul.mubr.f32.gmra.mrb[0].mxu0 %v530
        %v634 = vpop.f32.mrb[0].mxu0
        %v635 = vadd.f32 %v509, %v634
        %v636 = vpop.f32.mrb[0].mxu0
        %637 = vmatprep.mubr.f32.mxu0 0.0
        %638 = vmatmul.mubr.f32.gmra.mrb[0].mxu0 %v533
        %v639 = vpop.f32.mrb[0].mxu0
        %v640 = vadd.f32 %v509, %v639
        %v641 = vpop.f32.mrb[0].mxu0
        %642 = vdwg.mxu0
        %644 = vset.pattern.permute.xlu0 0
        %645 = vperm.xlu0 %644, %v397
        %v646 = vpop.permute.xlu0 %645
        %649 = vset.pattern.permute.xlu0 0
        %650 = vperm.xlu0 %649, %v398
        %v651 = vpop.permute.xlu0 %650
        %654 = vset.pattern.permute.xlu0 0
        %655 = vperm.xlu0 %654, %v399
        %v656 = vpop.permute.xlu0 %655
        %659 = vset.pattern.permute.xlu0 0
        %660 = vperm.xlu0 %659, %v400
        %v661 = vpop.permute.xlu0 %660
        %v664 = vsel %vm430, %v393, 0
        %v667 = vsel %vm430, %v394, 0
        %v670 = vsel %vm430, %v395, 0
        %v673 = vsel %vm430, %v396, 0
        %675 = vmatprep.subr.mxu0 0.0
        %676 = vmatpush1.xpose.msra.mxu0 %v512
        %677 = vmatprep.subr.mxu0 0.0
        %678 = vmatpush1.xpose.msra.mxu0 %v515
        %679 = vmatprep.subr.mxu0 0.0
        %680 = vmatpush1.xpose.msra.mxu0 %v518
        %681 = vmatprep.subr.mxu0 0.0
        %682 = vmatpush1.xpose.msra.mxu0 %v521
        %683 = vmatprep.subr.mxu0 0.0
        %684 = vmatpush1.xpose.msra.mxu0 %v524
        %685 = vmatprep.subr.mxu0 0.0
        %686 = vmatpush1.xpose.msra.mxu0 %v527
        %687 = vmatprep.subr.mxu0 0.0
        %688 = vmatpush1.xpose.msra.mxu0 %v530
        %689 = vmatprep.subr.mxu0 0.0
        %690 = vmatpush1.xpose.msra.mxu0 %v533
        %691 = vmatprep.subr.mxu0 0.0
        %692 = vmatpush1.xpose.msra.mxu0 0.0
        %693 = vmatprep.subr.mxu0 0.0
        %694 = vmatpush1.xpose.msra.mxu0 0.0
        %695 = vmatprep.subr.mxu0 0.0
        %696 = vmatpush1.xpose.msra.mxu0 0.0
        %697 = vmatprep.subr.mxu0 0.0
        %698 = vmatpush1.xpose.msra.mxu0 0.0
        %699 = vmatprep.subr.mxu0 0.0
        %700 = vmatpush1.xpose.msra.mxu0 0.0
        %701 = vmatprep.subr.mxu0 0.0
        %702 = vmatpush1.xpose.msra.mxu0 0.0
        %703 = vmatprep.subr.mxu0 0.0
        %704 = vmatpush1.xpose.msra.mxu0 0.0
        %705 = vmatprep.subr.mxu0 0.0
        %706 = vmatpush1.xpose.msra.mxu0 0.0
        %707 = vmatprep.subr.mxu0 0.0
        %708 = vmatpush1.xpose.msra.mxu0 0.0
        %709 = vmatprep.subr.mxu0 0.0
        %710 = vmatpush1.xpose.msra.mxu0 0.0
        %711 = vmatprep.subr.mxu0 0.0
        %712 = vmatpush1.xpose.msra.mxu0 0.0
        %713 = vmatprep.subr.mxu0 0.0
        %714 = vmatpush1.xpose.msra.mxu0 0.0
        %715 = vmatprep.subr.mxu0 0.0
        %716 = vmatpush1.xpose.msra.mxu0 0.0
        %717 = vmatprep.subr.mxu0 0.0
        %718 = vmatpush1.xpose.msra.mxu0 0.0
        %719 = vmatprep.subr.mxu0 0.0
        %720 = vmatpush1.xpose.msra.mxu0 0.0
        %721 = vmatprep.subr.mxu0 0.0
        %722 = vmatpush1.xpose.msra.mxu0 0.0
        %723 = vmatprep.subr.mxu0 0.0
        %724 = vmatpush1.xpose.msra.mxu0 0.0
        %725 = vmatprep.subr.mxu0 0.0
        %726 = vmatpush1.xpose.msra.mxu0 0.0
        %727 = vmatprep.subr.mxu0 0.0
        %728 = vmatpush1.xpose.msra.mxu0 0.0
        %729 = vmatprep.subr.mxu0 0.0
        %730 = vmatpush1.xpose.msra.mxu0 0.0
        %731 = vmatprep.subr.mxu0 0.0
        %732 = vmatpush1.xpose.msra.mxu0 0.0
        %733 = vmatprep.subr.mxu0 0.0
        %734 = vmatpush1.xpose.msra.mxu0 0.0
        %735 = vmatprep.subr.mxu0 0.0
        %736 = vmatpush1.xpose.msra.mxu0 0.0
        %737 = vmatprep.subr.mxu0 0.0
        %738 = vmatpush1.xpose.msra.mxu0 0.0
        %739 = vmatprep.mubr.f32.mxu0 0.0
        %740 = vmatmul.mubr.f32.gmra.mrb[0].mxu0 %v664
        %v741 = vpop.f32.mrb[0].mxu0
        %v742 = vadd.f32 %v646, %v741
        %v743 = vpop.f32.mrb[0].mxu0
        %744 = vmatprep.mubr.f32.mxu0 0.0
        %745 = vmatmul.mubr.f32.gmra.mrb[0].mxu0 %v667
        %v746 = vpop.f32.mrb[0].mxu0
        %v747 = vadd.f32 %v651, %v746
        %v748 = vpop.f32.mrb[0].mxu0
        %749 = vmatprep.mubr.f32.mxu0 0.0
        %750 = vmatmul.mubr.f32.gmra.mrb[0].mxu0 %v670
        %v751 = vpop.f32.mrb[0].mxu0
        %v752 = vadd.f32 %v656, %v751
        %v753 = vpop.f32.mrb[0].mxu0
        %754 = vmatprep.mubr.f32.mxu0 0.0
        %755 = vmatmul.mubr.f32.gmra.mrb[0].mxu0 %v673
        %v756 = vpop.f32.mrb[0].mxu0
        %v757 = vadd.f32 %v661, %v756
        %v758 = vpop.f32.mrb[0].mxu0
        %759 = vdwg.mxu0
        %v760 = vmul.f32 %v501, %v501
        %v761 = vmul.f32 %v503, %v503
        %v762 = vrot.slane %v760, 4
        %v763 = vadd.f32 %v760, %v762
        %v764 = vrot.slane %v763, 2
        %v765 = vadd.f32 %v763, %v764
        %v766 = vrot.slane %v765, 1
        %v767 = vadd.f32 %v765, %v766
        %v768 = vrot.slane %v761, 4
        %v769 = vadd.f32 %v761, %v768
        %v770 = vrot.slane %v769, 2
        %v771 = vadd.f32 %v769, %v770
        %v772 = vrot.slane %v771, 1
        %v773 = vadd.f32 %v771, %v772
        %v774 = vmax.f32 %v767, 1e-24
        %v775 = vmax.f32 %v773, 1e-24
        %v776 = vrsqrt.pop %v774
        %v777 = vrsqrt.pop %v775
        %v778 = vmul.f32 %v501, %v776
        %v779 = vmul.f32 %v503, %v777
        %v780 = vmul.f32 %v605, %v605
        %v781 = vmul.f32 %v610, %v610
        %v782 = vmul.f32 %v615, %v615
        %v783 = vmul.f32 %v620, %v620
        %v784 = vmul.f32 %v625, %v625
        %v785 = vmul.f32 %v630, %v630
        %v786 = vmul.f32 %v635, %v635
        %v787 = vmul.f32 %v640, %v640
        %vm788 = vcmask 64512
        %v789 = vsel %vm788, %v780, 0.0
        %790 = vadd.xlane.f32.xlu0 %v789
        %v791 = vpop.xlane.xlu0 %790
        %v792 = vsel %vm788, %v781, 0.0
        %793 = vadd.xlane.f32.xlu0 %v792
        %v794 = vpop.xlane.xlu0 %793
        %v795 = vsel %vm788, %v782, 0.0
        %796 = vadd.xlane.f32.xlu0 %v795
        %v797 = vpop.xlane.xlu0 %796
        %v798 = vsel %vm788, %v783, 0.0
        %799 = vadd.xlane.f32.xlu0 %v798
        %v800 = vpop.xlane.xlu0 %799
        %v801 = vsel %vm788, %v784, 0.0
        %802 = vadd.xlane.f32.xlu0 %v801
        %v803 = vpop.xlane.xlu0 %802
        %v804 = vsel %vm788, %v785, 0.0
        %805 = vadd.xlane.f32.xlu0 %v804
        %v806 = vpop.xlane.xlu0 %805
        %v807 = vsel %vm788, %v786, 0.0
        %808 = vadd.xlane.f32.xlu0 %v807
        %v809 = vpop.xlane.xlu0 %808
        %v810 = vsel %vm788, %v787, 0.0
        %811 = vadd.xlane.f32.xlu0 %v810
        %v812 = vpop.xlane.xlu0 %811
        %v813 = vmax.f32 %v791, 1e-24
        %v814 = vmax.f32 %v794, 1e-24
        %v815 = vmax.f32 %v797, 1e-24
        %v816 = vmax.f32 %v800, 1e-24
        %v817 = vmax.f32 %v803, 1e-24
        %v818 = vmax.f32 %v806, 1e-24
        %v819 = vmax.f32 %v809, 1e-24
        %v820 = vmax.f32 %v812, 1e-24
        %v821 = vrsqrt.pop %v813
        %v822 = vrsqrt.pop %v814
        %v823 = vrsqrt.pop %v815
        %v824 = vrsqrt.pop %v816
        %v825 = vrsqrt.pop %v817
        %v826 = vrsqrt.pop %v818
        %v827 = vrsqrt.pop %v819
        %v828 = vrsqrt.pop %v820
        %v829 = vmul.f32 %v605, %v821
        %v830 = vmul.f32 %v610, %v822
        %v831 = vmul.f32 %v615, %v823
        %v832 = vmul.f32 %v620, %v824
        %v833 = vmul.f32 %v625, %v825
        %v834 = vmul.f32 %v630, %v826
        %v835 = vmul.f32 %v635, %v827
        %v836 = vmul.f32 %v640, %v828
        %v838 = vsel %vm788, %v829, 0
        %v841 = vsel %vm788, %v830, 0
        %v844 = vsel %vm788, %v831, 0
        %v847 = vsel %vm788, %v832, 0
        %v850 = vsel %vm788, %v833, 0
        %v853 = vsel %vm788, %v834, 0
        %v856 = vsel %vm788, %v835, 0
        %v859 = vsel %vm788, %v836, 0
        %861 = vmatprep.subr.mxu0 %v779
        %862 = vmatpush1.msra.mxu0 %v778
        %863 = vmatprep.subr.mxu0 0.0
        %864 = vmatpush1.msra.mxu0 0.0
        %865 = vmatprep.subr.mxu0 0.0
        %866 = vmatpush1.msra.mxu0 0.0
        %867 = vmatprep.subr.mxu0 0.0
        %868 = vmatpush1.msra.mxu0 0.0
        %869 = vmatprep.subr.mxu0 0.0
        %870 = vmatpush1.msra.mxu0 0.0
        %871 = vmatprep.subr.mxu0 0.0
        %872 = vmatpush1.msra.mxu0 0.0
        %873 = vmatprep.subr.mxu0 0.0
        %874 = vmatpush1.msra.mxu0 0.0
        %875 = vmatprep.subr.mxu0 0.0
        %876 = vmatpush1.msra.mxu0 0.0
        %877 = vmatprep.subr.mxu0 0.0
        %878 = vmatpush1.msra.mxu0 0.0
        %879 = vmatprep.subr.mxu0 0.0
        %880 = vmatpush1.msra.mxu0 0.0
        %881 = vmatprep.subr.mxu0 0.0
        %882 = vmatpush1.msra.mxu0 0.0
        %883 = vmatprep.subr.mxu0 0.0
        %884 = vmatpush1.msra.mxu0 0.0
        %885 = vmatprep.subr.mxu0 0.0
        %886 = vmatpush1.msra.mxu0 0.0
        %887 = vmatprep.subr.mxu0 0.0
        %888 = vmatpush1.msra.mxu0 0.0
        %889 = vmatprep.subr.mxu0 0.0
        %890 = vmatpush1.msra.mxu0 0.0
        %891 = vmatprep.subr.mxu0 0.0
        %892 = vmatpush1.msra.mxu0 0.0
        %893 = vmatprep.subr.mxu0 0.0
        %894 = vmatpush1.msra.mxu0 0.0
        %895 = vmatprep.subr.mxu0 0.0
        %896 = vmatpush1.msra.mxu0 0.0
        %897 = vmatprep.subr.mxu0 0.0
        %898 = vmatpush1.msra.mxu0 0.0
        %899 = vmatprep.subr.mxu0 0.0
        %900 = vmatpush1.msra.mxu0 0.0
        %901 = vmatprep.subr.mxu0 0.0
        %902 = vmatpush1.msra.mxu0 0.0
        %903 = vmatprep.subr.mxu0 0.0
        %904 = vmatpush1.msra.mxu0 0.0
        %905 = vmatprep.subr.mxu0 0.0
        %906 = vmatpush1.msra.mxu0 0.0
        %907 = vmatprep.subr.mxu0 0.0
        %908 = vmatpush1.msra.mxu0 0.0
        %909 = vmatprep.subr.mxu0 0.0
        %910 = vmatpush1.msra.mxu0 0.0
        %911 = vmatprep.subr.mxu0 0.0
        %912 = vmatpush1.msra.mxu0 0.0
        %913 = vmatprep.subr.mxu0 0.0
        %914 = vmatpush1.msra.mxu0 0.0
        %915 = vmatprep.subr.mxu0 0.0
        %916 = vmatpush1.msra.mxu0 0.0
        %917 = vmatprep.subr.mxu0 0.0
        %918 = vmatpush1.msra.mxu0 0.0
        %919 = vmatprep.subr.mxu0 0.0
        %920 = vmatpush1.msra.mxu0 0.0
        %921 = vmatprep.subr.mxu0 0.0
        %922 = vmatpush1.msra.mxu0 0.0
        %923 = vmatprep.subr.mxu0 0.0
        %924 = vmatpush1.msra.mxu0 0.0
        %925 = vmatprep.mubr.f32.mxu0 0.0
        %926 = vmatmul.mubr.f32.gmra.mrb[0].mxu0 %v838
        %v927 = vpop.f32.mrb[0].mxu0
        %v928 = vadd.f32 0.0, %v927
        %v929 = vpop.f32.mrb[0].mxu0
        %v930 = vadd.f32 0.0, %v929
        %931 = vmatprep.mubr.f32.mxu0 0.0
        %932 = vmatmul.mubr.f32.gmra.mrb[0].mxu0 %v841
        %v933 = vpop.f32.mrb[0].mxu0
        %v934 = vadd.f32 0.0, %v933
        %v935 = vpop.f32.mrb[0].mxu0
        %v936 = vadd.f32 0.0, %v935
        %937 = vmatprep.mubr.f32.mxu0 0.0
        %938 = vmatmul.mubr.f32.gmra.mrb[0].mxu0 %v844
        %v939 = vpop.f32.mrb[0].mxu0
        %v940 = vadd.f32 0.0, %v939
        %v941 = vpop.f32.mrb[0].mxu0
        %v942 = vadd.f32 0.0, %v941
        %943 = vmatprep.mubr.f32.mxu0 0.0
        %944 = vmatmul.mubr.f32.gmra.mrb[0].mxu0 %v847
        %v945 = vpop.f32.mrb[0].mxu0
        %v946 = vadd.f32 0.0, %v945
        %v947 = vpop.f32.mrb[0].mxu0
        %v948 = vadd.f32 0.0, %v947
        %949 = vmatprep.mubr.f32.mxu0 0.0
        %950 = vmatmul.mubr.f32.gmra.mrb[0].mxu0 %v850
        %v951 = vpop.f32.mrb[0].mxu0
        %v952 = vadd.f32 0.0, %v951
        %v953 = vpop.f32.mrb[0].mxu0
        %v954 = vadd.f32 0.0, %v953
        %955 = vmatprep.mubr.f32.mxu0 0.0
        %956 = vmatmul.mubr.f32.gmra.mrb[0].mxu0 %v853
        %v957 = vpop.f32.mrb[0].mxu0
        %v958 = vadd.f32 0.0, %v957
        %v959 = vpop.f32.mrb[0].mxu0
        %v960 = vadd.f32 0.0, %v959
        %961 = vmatprep.mubr.f32.mxu0 0.0
        %962 = vmatmul.mubr.f32.gmra.mrb[0].mxu0 %v856
        %v963 = vpop.f32.mrb[0].mxu0
        %v964 = vadd.f32 0.0, %v963
        %v965 = vpop.f32.mrb[0].mxu0
        %v966 = vadd.f32 0.0, %v965
        %967 = vmatprep.mubr.f32.mxu0 0.0
        %968 = vmatmul.mubr.f32.gmra.mrb[0].mxu0 %v859
        %v969 = vpop.f32.mrb[0].mxu0
        %v970 = vadd.f32 0.0, %v969
        %v971 = vpop.f32.mrb[0].mxu0
        %v972 = vadd.f32 0.0, %v971
        %973 = vdwg.mxu0
        %975 = vset.pattern.permute.xlu0 0
        %976 = vperm.xlu0 %975, %v401
        %v977 = vpop.permute.xlu0 %976
        %980 = vset.pattern.permute.xlu0 0
        %981 = vperm.xlu0 %980, %v402
        %v982 = vpop.permute.xlu0 %981
        %985 = vset.pattern.permute.xlu0 0
        %986 = vperm.xlu0 %985, %v403
        %v987 = vpop.permute.xlu0 %986
        %990 = vset.pattern.permute.xlu0 0
        %991 = vperm.xlu0 %990, %v404
        %v992 = vpop.permute.xlu0 %991
        %995 = vset.pattern.permute.xlu0 0
        %996 = vperm.xlu0 %995, %v405
        %v997 = vpop.permute.xlu0 %996
        %1000 = vset.pattern.permute.xlu0 0
        %1001 = vperm.xlu0 %1000, %v406
        %v1002 = vpop.permute.xlu0 %1001
        %1005 = vset.pattern.permute.xlu0 0
        %1006 = vperm.xlu0 %1005, %v407
        %v1007 = vpop.permute.xlu0 %1006
        %1010 = vset.pattern.permute.xlu0 0
        %1011 = vperm.xlu0 %1010, %v408
        %v1012 = vpop.permute.xlu0 %1011
        %v1014 = vmul.f32 %v928, %v977
        %v1015 = vmul.f32 %v930, %v977
        %v1016 = vmul.f32 %v934, %v982
        %v1017 = vmul.f32 %v936, %v982
        %v1018 = vmul.f32 %v940, %v987
        %v1019 = vmul.f32 %v942, %v987
        %v1020 = vmul.f32 %v946, %v992
        %v1021 = vmul.f32 %v948, %v992
        %v1022 = vmul.f32 %v952, %v997
        %v1023 = vmul.f32 %v954, %v997
        %v1024 = vmul.f32 %v958, %v1002
        %v1025 = vmul.f32 %v960, %v1002
        %v1026 = vmul.f32 %v964, %v1007
        %v1027 = vmul.f32 %v966, %v1007
        %v1028 = vmul.f32 %v970, %v1012
        %v1029 = vmul.f32 %v972, %v1012
        %1030 = vst [vmem:[%s378] sm:$0xff] %v1014
        %1031 = vst [vmem:[%s378 + $0x8] sm:$0xff] %v1015
        %1032 = vst [vmem:[%s378 + $0x10] sm:$0xff] %v1016
        %1033 = vst [vmem:[%s378 + $0x18] sm:$0xff] %v1017
        %1034 = vst [vmem:[%s378 + $0x20] sm:$0xff] %v1018
        %1035 = vst [vmem:[%s378 + $0x28] sm:$0xff] %v1019
        %1036 = vst [vmem:[%s378 + $0x30] sm:$0xff] %v1020
        %1037 = vst [vmem:[%s378 + $0x38] sm:$0xff] %v1021
        %1038 = vst [vmem:[%s378 + $0x40] sm:$0xff] %v1022
        %1039 = vst [vmem:[%s378 + $0x48] sm:$0xff] %v1023
        %1040 = vst [vmem:[%s378 + $0x50] sm:$0xff] %v1024
        %1041 = vst [vmem:[%s378 + $0x58] sm:$0xff] %v1025
        %1042 = vst [vmem:[%s378 + $0x60] sm:$0xff] %v1026
        %1043 = vst [vmem:[%s378 + $0x68] sm:$0xff] %v1027
        %1044 = vst [vmem:[%s378 + $0x70] sm:$0xff] %v1028
        %1045 = vst [vmem:[%s378 + $0x78] sm:$0xff] %v1029
        %v1046 = vmax.f32 %v1014, %v1018
        %v1047 = vmax.f32 %v1016, %v1020
        %v1048 = vmax.f32 %v1046, %v1022
        %v1049 = vmax.f32 %v1047, %v1024
        %v1050 = vmax.f32 %v1048, %v1026
        %v1051 = vmax.f32 %v1049, %v1028
        %v1052 = vmax.f32 %v1050, %v1051
        %v1053 = vrot.slane %v1052, 4
        %v1054 = vmax.f32 %v1052, %v1053
        %v1055 = vrot.slane %v1054, 2
        %v1056 = vmax.f32 %v1054, %v1055
        %v1057 = vrot.slane %v1056, 1
        %v1058 = vmax.f32 %v1056, %v1057
        %v1059 = vmax.f32 %v1015, %v1019
        %v1060 = vmax.f32 %v1017, %v1021
        %v1061 = vmax.f32 %v1059, %v1023
        %v1062 = vmax.f32 %v1060, %v1025
        %v1063 = vmax.f32 %v1061, %v1027
        %v1064 = vmax.f32 %v1062, %v1029
        %v1065 = vmax.f32 %v1063, %v1064
        %v1066 = vrot.slane %v1065, 4
        %v1067 = vmax.f32 %v1065, %v1066
        %v1068 = vrot.slane %v1067, 2
        %v1069 = vmax.f32 %v1067, %v1068
        %v1070 = vrot.slane %v1069, 1
        %v1071 = vmax.f32 %v1069, %v1070
        %v1072 = vsub.f32 %v1014, %v1058
        %v1073 = vsub.f32 %v1015, %v1071
        %v1074 = vsub.f32 %v1016, %v1058
        %v1075 = vsub.f32 %v1017, %v1071
        %v1076 = vsub.f32 %v1018, %v1058
        %v1077 = vsub.f32 %v1019, %v1071
        %v1078 = vsub.f32 %v1020, %v1058
        %v1079 = vsub.f32 %v1021, %v1071
        %v1080 = vsub.f32 %v1022, %v1058
        %v1081 = vsub.f32 %v1023, %v1071
        %v1082 = vsub.f32 %v1024, %v1058
        %v1083 = vsub.f32 %v1025, %v1071
        %v1084 = vsub.f32 %v1026, %v1058
        %v1085 = vsub.f32 %v1027, %v1071
        %v1086 = vsub.f32 %v1028, %v1058
        %v1087 = vsub.f32 %v1029, %v1071
        %v1088 = vmul.f32 %v1072, 1.442695
        %v1089 = vpow.pop %v1088
        %v1090 = vmul.f32 %v1073, 1.442695
        %v1091 = vpow.pop %v1090
        %v1092 = vmul.f32 %v1074, 1.442695
        %v1093 = vpow.pop %v1092
        %v1094 = vmul.f32 %v1075, 1.442695
        %v1095 = vpow.pop %v1094
        %v1096 = vmul.f32 %v1076, 1.442695
        %v1097 = vpow.pop %v1096
        %v1098 = vmul.f32 %v1077, 1.442695
        %v1099 = vpow.pop %v1098
        %v1100 = vmul.f32 %v1078, 1.442695
        %v1101 = vpow.pop %v1100
        %v1102 = vmul.f32 %v1079, 1.442695
        %v1103 = vpow.pop %v1102
        %v1104 = vmul.f32 %v1080, 1.442695
        %v1105 = vpow.pop %v1104
        %v1106 = vmul.f32 %v1081, 1.442695
        %v1107 = vpow.pop %v1106
        %v1108 = vmul.f32 %v1082, 1.442695
        %v1109 = vpow.pop %v1108
        %v1110 = vmul.f32 %v1083, 1.442695
        %v1111 = vpow.pop %v1110
        %v1112 = vmul.f32 %v1084, 1.442695
        %v1113 = vpow.pop %v1112
        %v1114 = vmul.f32 %v1085, 1.442695
        %v1115 = vpow.pop %v1114
        %v1116 = vmul.f32 %v1086, 1.442695
        %v1117 = vpow.pop %v1116
        %v1118 = vmul.f32 %v1087, 1.442695
        %v1119 = vpow.pop %v1118
        %v1120 = vadd.f32 %v1089, %v1093
        %v1121 = vadd.f32 %v1120, %v1097
        %v1122 = vadd.f32 %v1121, %v1101
        %v1123 = vadd.f32 %v1122, %v1105
        %v1124 = vadd.f32 %v1123, %v1109
        %v1125 = vadd.f32 %v1124, %v1113
        %v1126 = vadd.f32 %v1125, %v1117
        %v1127 = vrot.slane %v1126, 4
        %v1128 = vadd.f32 %v1126, %v1127
        %v1129 = vrot.slane %v1128, 2
        %v1130 = vadd.f32 %v1128, %v1129
        %v1131 = vrot.slane %v1130, 1
        %v1132 = vadd.f32 %v1130, %v1131
        %v1133 = vadd.f32 %v1091, %v1095
        %v1134 = vadd.f32 %v1133, %v1099
        %v1135 = vadd.f32 %v1134, %v1103
        %v1136 = vadd.f32 %v1135, %v1107
        %v1137 = vadd.f32 %v1136, %v1111
        %v1138 = vadd.f32 %v1137, %v1115
        %v1139 = vadd.f32 %v1138, %v1119
        %v1140 = vrot.slane %v1139, 4
        %v1141 = vadd.f32 %v1139, %v1140
        %v1142 = vrot.slane %v1141, 2
        %v1143 = vadd.f32 %v1141, %v1142
        %v1144 = vrot.slane %v1143, 1
        %v1145 = vadd.f32 %v1143, %v1144
        %v1146 = vrcp.pop %v1132
        %v1147 = vrcp.pop %v1145
        %v1148 = vmul.f32 %v1089, %v1146
        %v1149 = vmul.f32 %v1091, %v1147
        %v1150 = vmul.f32 %v1093, %v1146
        %v1151 = vmul.f32 %v1095, %v1147
        %v1152 = vmul.f32 %v1097, %v1146
        %v1153 = vmul.f32 %v1099, %v1147
        %v1154 = vmul.f32 %v1101, %v1146
        %v1155 = vmul.f32 %v1103, %v1147
        %v1156 = vmul.f32 %v1105, %v1146
        %v1157 = vmul.f32 %v1107, %v1147
        %v1158 = vmul.f32 %v1109, %v1146
        %v1159 = vmul.f32 %v1111, %v1147
        %v1160 = vmul.f32 %v1113, %v1146
        %v1161 = vmul.f32 %v1115, %v1147
        %v1162 = vmul.f32 %v1117, %v1146
        %v1163 = vmul.f32 %v1119, %v1147
        %vm1164 = vcmask 523264
        %v1166 = vsel %vm1164, %v742, 0
        %v1169 = vsel %vm1164, %v747, 0
        %v1172 = vsel %vm1164, %v752, 0
        %v1175 = vsel %vm1164, %v757, 0
        %1177 = vmatprep.subr.mxu0 %v1149
        %1178 = vmatpush1.msra.mxu0 %v1148
        %1179 = vmatprep.subr.mxu0 %v1151
        %1180 = vmatpush1.msra.mxu0 %v1150
        %1181 = vmatprep.subr.mxu0 %v1153
        %1182 = vmatpush1.msra.mxu0 %v1152
        %1183 = vmatprep.subr.mxu0 %v1155
        %1184 = vmatpush1.msra.mxu0 %v1154
        %1185 = vmatprep.subr.mxu0 %v1157
        %1186 = vmatpush1.msra.mxu0 %v1156
        %1187 = vmatprep.subr.mxu0 %v1159
        %1188 = vmatpush1.msra.mxu0 %v1158
        %1189 = vmatprep.subr.mxu0 %v1161
        %1190 = vmatpush1.msra.mxu0 %v1160
        %1191 = vmatprep.subr.mxu0 %v1163
        %1192 = vmatpush1.msra.mxu0 %v1162
        %1193 = vmatprep.subr.mxu0 0.0
        %1194 = vmatpush1.msra.mxu0 0.0
        %1195 = vmatprep.subr.mxu0 0.0
        %1196 = vmatpush1.msra.mxu0 0.0
        %1197 = vmatprep.subr.mxu0 0.0
        %1198 = vmatpush1.msra.mxu0 0.0
        %1199 = vmatprep.subr.mxu0 0.0
        %1200 = vmatpush1.msra.mxu0 0.0
        %1201 = vmatprep.subr.mxu0 0.0
        %1202 = vmatpush1.msra.mxu0 0.0
        %1203 = vmatprep.subr.mxu0 0.0
        %1204 = vmatpush1.msra.mxu0 0.0
        %1205 = vmatprep.subr.mxu0 0.0
        %1206 = vmatpush1.msra.mxu0 0.0
        %1207 = vmatprep.subr.mxu0 0.0
        %1208 = vmatpush1.msra.mxu0 0.0
        %1209 = vmatprep.subr.mxu0 0.0
        %1210 = vmatpush1.msra.mxu0 0.0
        %1211 = vmatprep.subr.mxu0 0.0
        %1212 = vmatpush1.msra.mxu0 0.0
        %1213 = vmatprep.subr.mxu0 0.0
        %1214 = vmatpush1.msra.mxu0 0.0
        %1215 = vmatprep.subr.mxu0 0.0
        %1216 = vmatpush1.msra.mxu0 0.0
        %1217 = vmatprep.subr.mxu0 0.0
        %1218 = vmatpush1.msra.mxu0 0.0
        %1219 = vmatprep.subr.mxu0 0.0
        %1220 = vmatpush1.msra.mxu0 0.0
        %1221 = vmatprep.subr.mxu0 0.0
        %1222 = vmatpush1.msra.mxu0 0.0
        %1223 = vmatprep.subr.mxu0 0.0
        %1224 = vmatpush1.msra.mxu0 0.0
        %1225 = vmatprep.subr.mxu0 0.0
        %1226 = vmatpush1.msra.mxu0 0.0
        %1227 = vmatprep.subr.mxu0 0.0
        %1228 = vmatpush1.msra.mxu0 0.0
        %1229 = vmatprep.subr.mxu0 0.0
        %1230 = vmatpush1.msra.mxu0 0.0
        %1231 = vmatprep.subr.mxu0 0.0
        %1232 = vmatpush1.msra.mxu0 0.0
        %1233 = vmatprep.subr.mxu0 0.0
        %1234 = vmatpush1.msra.mxu0 0.0
        %1235 = vmatprep.subr.mxu0 0.0
        %1236 = vmatpush1.msra.mxu0 0.0
        %1237 = vmatprep.subr.mxu0 0.0
        %1238 = vmatpush1.msra.mxu0 0.0
        %1239 = vmatprep.subr.mxu0 0.0
        %1240 = vmatpush1.msra.mxu0 0.0
        %1241 = vmatprep.mubr.f32.mxu0 0.0
        %1242 = vmatmul.mubr.f32.gmra.mrb[0].mxu0 %v1166
        %v1243 = vpop.f32.mrb[0].mxu0
        %v1244 = vadd.f32 0.0, %v1243
        %v1245 = vpop.f32.mrb[0].mxu0
        %v1246 = vadd.f32 0.0, %v1245
        %1247 = vmatprep.mubr.f32.mxu0 0.0
        %1248 = vmatmul.mubr.f32.gmra.mrb[0].mxu0 %v1169
        %v1249 = vpop.f32.mrb[0].mxu0
        %v1250 = vadd.f32 0.0, %v1249
        %v1251 = vpop.f32.mrb[0].mxu0
        %v1252 = vadd.f32 0.0, %v1251
        %1253 = vmatprep.mubr.f32.mxu0 0.0
        %1254 = vmatmul.mubr.f32.gmra.mrb[0].mxu0 %v1172
        %v1255 = vpop.f32.mrb[0].mxu0
        %v1256 = vadd.f32 0.0, %v1255
        %v1257 = vpop.f32.mrb[0].mxu0
        %v1258 = vadd.f32 0.0, %v1257
        %1259 = vmatprep.mubr.f32.mxu0 0.0
        %1260 = vmatmul.mubr.f32.gmra.mrb[0].mxu0 %v1175
        %v1261 = vpop.f32.mrb[0].mxu0
        %v1262 = vadd.f32 0.0, %v1261
        %v1263 = vpop.f32.mrb[0].mxu0
        %v1264 = vadd.f32 0.0, %v1263
        %1265 = vdwg.mxu0
        %1266 = vst [vmem:[%s371] sm:$0xff] %v1244
        %1267 = vst [vmem:[%s371 + $0x8] sm:$0xff] %v1246
        %1268 = vst [vmem:[%s371 + $0x10] sm:$0xff] %v1250
        %1269 = vst [vmem:[%s371 + $0x18] sm:$0xff] %v1252
        %1270 = vst [vmem:[%s371 + $0x20] sm:$0xff] %v1256
        %1271 = vst [vmem:[%s371 + $0x28] sm:$0xff] %v1258
        %1272 = vst [vmem:[%s371 + $0x30] sm:$0xff] %v1262
        %1273 = vst [vmem:[%s371 + $0x38] sm:$0xff] %v1264
        %s1274 = sand.u32 %s235, 1
        %s1275 = scalar_lea.sflag [#allocation3], %s1274
        %s1276 = sand.u32 %s235, 1
        %s1277 = smul.addr %s1276, 64
        %s1278 = scalar_lea.vmem [#allocation2], %s1277
        %s1279 = sand.u32 %s261, 1
        %s1280 = scalar_lea.sflag [#allocation5], %s1279
        %s1281 = sand.u32 %s261, 1
        %s1282 = smul.addr %s1281, 128
        %s1283 = scalar_lea.vmem [#allocation4], %s1282
        // Predicated region
        $region57: #{atd_attention.1} parent=55 // pred_check
          %p1284 = pneg %p245
        $region58: #{atd_attention.1} parent=55 // pred_check_branch
          %1286 = sbr.rel (%p1284) target = $region60
        $region59: #{atd_attention.1} parent=55 // pred_region
          %s1288 = ssub.s32 1024, 1024
          %1289 = vsyncadd %s1275, %s1288
          %s1290 = smul.addr %s28, 8
          %s1291 = smul.addr %s1290, 128
          %s1292 = scalar_lea.hbm %s9, %s1291
          %s1293 = sshll.u32 %s1278, 4
          %s1294 = int_to_ptr.vmem [resolvable:$true] %s1293
          %1299 = dma.vmem_to_hbm [thread:$0]  %s1294, 1024, %s1292, %s1275, 256, 256, 16
        $region60: #{atd_attention.1} parent=55 // pred_fallthru
          _
        // Predicated region
        $region61: #{atd_attention.1} parent=55 // pred_check
          %p1300 = pneg %p271
        $region62: #{atd_attention.1} parent=55 // pred_check_branch
          %1302 = sbr.rel (%p1300) target = $region64
        $region63: #{atd_attention.1} parent=55 // pred_region
          %s1304 = ssub.s32 2048, 2048
          %1305 = vsyncadd %s1280, %s1304
          %s1306 = smul.addr %s28, 16
          %s1307 = smul.addr %s1306, 128
          %s1308 = scalar_lea.hbm %s10, %s1307
          %s1309 = sshll.u32 %s1283, 4
          %s1310 = int_to_ptr.vmem [resolvable:$true] %s1309
          %1315 = dma.vmem_to_hbm [thread:$0]  %s1310, 2048, %s1308, %s1280, 256, 256, 16
        $region64: #{atd_attention.1} parent=55 // pred_fallthru
          _
      $region56: #{atd_attention.1} parent=5 // pred_fallthru
        _
      %p1316 = scmp.le.s32.totalorder 2, %s23
      // Predicated region
      $region65: #{atd_attention.1} parent=5 // pred_check
        %p1317 = pneg %p1316
      $region66: #{atd_attention.1} parent=5 // pred_check_branch
        %1319 = sbr.rel (%p1317) target = $region68
      $region67: #{atd_attention.1} parent=5 // pred_region
        %s1320 = ssub.s32 %s23, 2
        // Predicated region
        $region69: #{atd_attention.1} parent=67 // pred_check
          %p1321 = pneg %p251
        $region70: #{atd_attention.1} parent=67 // pred_check_branch
          %1323 = sbr.rel (%p1321) target = $region72
        $region71: #{atd_attention.1} parent=67 // pred_region
          %s1324 = sand.u32 %s236, 1
          %s1325 = scalar_lea.sflag [#allocation3], %s1324
          %s1326 = sand.u32 %s236, 1
          %s1327 = smul.addr %s1326, 64
          %s1328 = scalar_lea.vmem [#allocation2], %s1327
          %1329 = dma.done %s1325, 1024
        $region72: #{atd_attention.1} parent=67 // pred_fallthru
          _
        // Predicated region
        $region73: #{atd_attention.1} parent=67 // pred_check
          %p1330 = pneg %p277
        $region74: #{atd_attention.1} parent=67 // pred_check_branch
          %1332 = sbr.rel (%p1330) target = $region76
        $region75: #{atd_attention.1} parent=67 // pred_region
          %s1333 = sand.u32 %s262, 1
          %s1334 = scalar_lea.sflag [#allocation5], %s1333
          %s1335 = sand.u32 %s262, 1
          %s1336 = smul.addr %s1335, 128
          %s1337 = scalar_lea.vmem [#allocation4], %s1336
          %1338 = dma.done %s1334, 2048
        $region76: #{atd_attention.1} parent=67 // pred_fallthru
          _
      $region68: #{atd_attention.1} parent=5 // pred_fallthru
        _
    $region6: #{atd_attention.1} parent=1 // loop_footer
      %s27 = sadd.s32 1, %s23
    $region7: #{atd_attention.1} parent=1 // loop_footer_branch
      %22 = sbr.rel target = $region3
    $region8: #{atd_attention.1} parent=1 // loop_exit
      _
    %1339 = vsyncpa [#allocation3], 1
    %s1340 = scalar_lea.sflag [#allocation3], 1
    %1341 = vsyncpa %s1340, 1
    %1342 = vsyncpa [#allocation5], 1
    %s1343 = scalar_lea.sflag [#allocation5], 1
    %1344 = vsyncpa %s1343, 1

</llo_original>
